<compile_context>
chip_gen: v7x
topology: tpu7x:2x2x1
jax: 0.10.0
libtpu: 0.0.40
codegen_flags: <defaults>
</compile_context>

<pallas_src>
import functools

import jax
import jax.numpy as jnp
from jax.experimental import pallas as pl
from jax.experimental.pallas import tpu as pltpu


def _attention_kernel(qkv_ref, w_ref, b_ref, bo_ref, o_ref, *,
                      num_heads, embed_dim, seq_len, batch_tile,
                      compute_dtype):
    """Grid = (B // Bt,). All heads and Bt batches handled per invocation.

    Operand layouts (prepared host-side, see wrapper):
      qkv_ref : (3, Bt, N, E)  q/k/v stacked, compute_dtype
      w_ref   : (3, E, H*E)    (in, out) projections; [2] is the folded Wvo
      b_ref   : (3, 1, H*E)    float32 biases;        [2] is the folded bvo
      bo_ref  : (1, E)         float32 output bias
    """
    E, H, N, Bt = embed_dim, num_heads, seq_len, batch_tile
    cdt = compute_dtype

    # (Bt, N, E) tiles -> (Bt*N, E) row slabs (merge of major dims only;
    # N == 8 == the f32 sublane tile, so this is layout-preserving).
    q2 = qkv_ref[0].reshape(Bt * N, E)
    k2 = qkv_ref[1].reshape(Bt * N, E)
    v2 = qkv_ref[2].reshape(Bt * N, E)

    # Fused lane-dense projections for ALL heads at once (MXU, f32 accumulate),
    # f32 bias add, then ONE cast per array (hoisted out of the head loop).
    # w_ref[2]/b_ref[2] carry the folded (Wv_h^T Wo_h^T)/E and (bv_h Wo_h^T)/E,
    # so the per-head output-projection matmul no longer exists.
    qall = (jnp.dot(q2, w_ref[0], preferred_element_type=jnp.float32)
            + b_ref[0]).astype(cdt)
    kall = (jnp.dot(k2, w_ref[1], preferred_element_type=jnp.float32)
            + b_ref[1]).astype(cdt)
    vall = (jnp.dot(v2, w_ref[2], preferred_element_type=jnp.float32)
            + b_ref[2]).astype(cdt)

    # Output bias folded into the accumulator init (no per-head adds).
    acc = jnp.zeros((Bt, N, E), jnp.float32) + bo_ref[...]

    # TODO(synk): if the lowered MLIR shows a per-head K relayout from the
    # 'bqd,bkd->bqk' contraction, project K pre-transposed instead; negligible
    # at N=8 so it is not done here.
    for h in range(H):                       # static unroll; H is small
        sl = slice(h * E, (h + 1) * E)
        qh = qall[:, sl].reshape(Bt, N, E)
        kh = kall[:, sl].reshape(Bt, N, E)
        vh = vall[:, sl].reshape(Bt, N, E)
        s = jnp.einsum('bqd,bkd->bqk', qh, kh,
                       preferred_element_type=jnp.float32)           # Q K^T
        acc = acc + jnp.einsum('bqk,bkd->bqd', s.astype(cdt), vh,
                               preferred_element_type=jnp.float32)
    o_ref[...] = acc.astype(o_ref.dtype)


def _pick_batch_tile(B):
    """Grid of 2 on v7x (2 TensorCores/chip share the parallel batch axis);
    a single grid step on single-core v5e/v6e."""
    kind = ""
    try:
        kind = jax.devices()[0].device_kind.lower()
    except Exception:
        pass
    two_tc = ("v7" in kind) or ("tpu7" in kind)
    n_blocks = 2 if (two_tc and B >= 2 and B % 2 == 0) else 1
    return B // n_blocks


def multi_head_attention(q, k, v, params, *, compute_dtype=jnp.float32,
                         batch_tile=None):
    """q, k, v: (B, N, E) float32. Returns (B, N, E) float32."""
    B, N, E = q.shape
    H = params["wq"].shape[0]
    hp = jax.lax.Precision.HIGHEST

    # ---- one-time host-side weight preparation ------------------------------
    # torch Linear weight layout is (out, in); store as (in, out) with all
    # heads stacked along the output axis -> lane-dense (E, H*E) projections.
    wq_all = jnp.transpose(params["wq"], (2, 0, 1)).reshape(E, H * E)
    wk_all = jnp.transpose(params["wk"], (2, 0, 1)).reshape(E, H * E)
    # Fold the output projection and the 1/E scale into the value projection:
    #   out = bo + sum_h (q_h k_h^T) @ (v @ Wvo_h + bvo_h)
    #   Wvo_h = Wv_h^T Wo_h^T / E ,  bvo_h = bv_h Wo_h^T / E
    wo_h = params["wo_full"].reshape(E, H, E)          # [o, h, m] = Wo[o, h*E+m]
    wvo = jnp.einsum('hmi,ohm->hio', params["wv"], wo_h, precision=hp) / E
    wvo_all = jnp.transpose(wvo, (1, 0, 2)).reshape(E, H * E)
    bvo_all = (jnp.einsum('hm,ohm->ho', params["bv"], wo_h, precision=hp) / E
               ).reshape(1, H * E).astype(jnp.float32)
    bq_all = params["bq"].reshape(1, H * E).astype(jnp.float32)
    bk_all = params["bk"].reshape(1, H * E).astype(jnp.float32)
    bo = params["bo"].reshape(1, E).astype(jnp.float32)

    cdt = jnp.dtype(compute_dtype)
    # Stack q/k/v into ONE input tensor -> a single input DMA per grid step.
    qkv = jnp.stack([q, k, v], axis=0).astype(cdt)                     # (3,B,N,E)
    w_all = jnp.stack([wq_all, wk_all, wvo_all], axis=0).astype(cdt)   # (3,E,H*E)
    b_all = jnp.stack([bq_all, bk_all, bvo_all], axis=0)               # (3,1,H*E) f32

    if batch_tile is None:
        batch_tile = _pick_batch_tile(B)
    assert B % batch_tile == 0, "batch_tile must divide the batch size"
    grid = (B // batch_tile,)

    kernel = functools.partial(_attention_kernel, num_heads=H, embed_dim=E,
                               seq_len=N, batch_tile=batch_tile,
                               compute_dtype=cdt)

    isz = cdt.itemsize
    flops = B * (3 * 2 * N * E * (H * E) + H * 4 * N * N * E)
    bytes_accessed = ((3 * B * N * E + 3 * E * H * E) * isz
                      + (3 * H * E + E) * 4 + B * N * E * 4)

    return pl.pallas_call(
        kernel,
        out_shape=jax.ShapeDtypeStruct((B, N, E), jnp.float32),
        grid_spec=pltpu.PrefetchScalarGridSpec(
            num_scalar_prefetch=0,
            grid=grid,
            in_specs=[
                pl.BlockSpec((3, batch_tile, N, E), lambda b: (0, b, 0, 0)),  # qkv
                pl.BlockSpec((3, E, H * E), lambda b: (0, 0, 0)),   # weights (once)
                pl.BlockSpec((3, 1, H * E), lambda b: (0, 0, 0)),   # biases  (once)
                pl.BlockSpec((1, E), lambda b: (0, 0)),             # bo      (once)
            ],
            out_specs=pl.BlockSpec((batch_tile, N, E), lambda b: (b, 0, 0)),
        ),
        compiler_params=pltpu.CompilerParams(
            dimension_semantics=("parallel",),        # v7x: 2 TCs split batch
            vmem_limit_bytes=32 * 1024 * 1024),       # explicit for v7x budget
        cost_estimate=pl.CostEstimate(
            flops=int(flops), transcendentals=0,
            bytes_accessed=int(bytes_accessed)),
    )(qkv, w_all, b_all, bo)


def init_params(key, embed_dim, num_heads):
    """Deterministic init matching torch.nn.Linear defaults:
    U(-1/sqrt(fan_in), 1/sqrt(fan_in)) for weight and bias. Torch layout."""
    E, H = embed_dim, num_heads
    keys = jax.random.split(key, 8)
    lim = 1.0 / jnp.sqrt(E)
    lim_o = 1.0 / jnp.sqrt(E * H)

    wq = jax.random.uniform(keys[0], (H, E, E), jnp.float32, -lim, lim)
    bq = jax.random.uniform(keys[1], (H, E), jnp.float32, -lim, lim)
    wk = jax.random.uniform(keys[2], (H, E, E), jnp.float32, -lim, lim)
    bk = jax.random.uniform(keys[3], (H, E), jnp.float32, -lim, lim)
    wv = jax.random.uniform(keys[4], (H, E, E), jnp.float32, -lim, lim)
    bv = jax.random.uniform(keys[5], (H, E), jnp.float32, -lim, lim)
    wo_full = jax.random.uniform(keys[6], (E, H * E), jnp.float32, -lim_o, lim_o)
    bo = jax.random.uniform(keys[7], (E,), jnp.float32, -lim_o, lim_o)

    return dict(wq=wq, bq=bq, wk=wk, bk=bk, wv=wv, bv=bv,
                wo_full=wo_full, bo=bo)


def reference(q, k, v, params):
    """Plain-JAX reimplementation of the PyTorch forward (no softmax)."""
    H = params["wq"].shape[0]
    E = q.shape[-1]
    hp = jax.lax.Precision.HIGHEST
    outs = []
    for h in range(H):
        qh = jnp.matmul(q, params["wq"][h].T, precision=hp) + params["bq"][h]
        kh = jnp.matmul(k, params["wk"][h].T, precision=hp) + params["bk"][h]
        vh = jnp.matmul(v, params["wv"][h].T, precision=hp) + params["bv"][h]
        s = jnp.matmul(qh, jnp.swapaxes(kh, 1, 2), precision=hp)
        outs.append(jnp.matmul(s, vh, precision=hp) / E)
    cat = jnp.concatenate(outs, axis=2)                      # (B, N, H*E)
    return jnp.matmul(cat, params["wo_full"].T, precision=hp) + params["bo"]


if __name__ == "__main__":
    B, N, E, H = 2, 8, 32, 4

    key = jax.random.PRNGKey(0)
    kq, kk, kv, kp = jax.random.split(key, 4)
    q = jax.random.normal(kq, (B, N, E), jnp.float32)
    k = jax.random.normal(kk, (B, N, E), jnp.float32)
    v = jax.random.normal(kv, (B, N, E), jnp.float32)
    params = init_params(kp, E, H)

    ref = reference(q, k, v, params)

    # float32 path (exactness check).
    out = jax.block_until_ready(multi_head_attention(q, k, v, params))
    assert out.shape == (B, N, E)
    assert jnp.allclose(out, ref, atol=1e-3, rtol=1e-3), "f32 mismatch vs reference"

    # bf16-MXU-input path (f32 accumulation, weights folded in f32 before the
    # bf16 cast) — the v5e/v6e/v7x fast path; looser tolerance vs f32 reference.
    out_bf16 = jax.block_until_ready(
        multi_head_attention(q, k, v, params, compute_dtype=jnp.bfloat16))
    assert jnp.allclose(out_bf16, ref, atol=5e-2, rtol=5e-2), "bf16 mismatch vs reference"

    print("KERNEL_OK")
</pallas_src>

<mosaic_0001>
module attributes {stable_mosaic.version = 11 : i64} {
  func.func @_attention_kernel(%arg0: i32, %arg1: memref<3x2x8x32xf32, #tpu.memory_space<vmem>>, %arg2: memref<3x32x128xf32, #tpu.memory_space<vmem>>, %arg3: memref<3x1x128xf32, #tpu.memory_space<vmem>>, %arg4: memref<1x32xf32, #tpu.memory_space<vmem>>, %arg5: memref<2x8x32xf32, #tpu.memory_space<vmem>>) attributes {dimension_semantics = [#tpu.dimension_semantics<parallel>], iteration_bounds = array<i64: 1>, scalar_prefetch = 0 : i64, scratch_operands = 0 : i64, tpu.core_type = #tpu.core_type<tc>, window_params = [{transform_indices = @transform_0, window_bounds = array<i64: 3, 2, 8, 32>}, {pipeline_mode = #tpu.pipeline_mode<synchronous>, transform_indices = @transform_1, window_bounds = array<i64: 3, 32, 128>}, {pipeline_mode = #tpu.pipeline_mode<synchronous>, transform_indices = @transform_2, window_bounds = array<i64: 3, 1, 128>}, {pipeline_mode = #tpu.pipeline_mode<synchronous>, transform_indices = @transform_3, window_bounds = array<i64: 1, 32>}, {transform_indices = @transform_4, window_bounds = array<i64: 2, 8, 32>}]} {
    %c0 = arith.constant 0 : index
    %c0_0 = arith.constant 0 : index
    %c0_1 = arith.constant 0 : index
    %c0_2 = arith.constant 0 : index
    %0 = vector.load %arg1[%c0, %c0_0, %c0_1, %c0_2] : memref<3x2x8x32xf32, #tpu.memory_space<vmem>>, vector<1x2x8x32xf32>
    %1 = vector.shape_cast %0 : vector<1x2x8x32xf32> to vector<2x8x32xf32>
    %2 = vector.shape_cast %1 : vector<2x8x32xf32> to vector<16x32xf32>
    %c1 = arith.constant 1 : index
    %c0_3 = arith.constant 0 : index
    %c0_4 = arith.constant 0 : index
    %c0_5 = arith.constant 0 : index
    %3 = vector.load %arg1[%c1, %c0_3, %c0_4, %c0_5] : memref<3x2x8x32xf32, #tpu.memory_space<vmem>>, vector<1x2x8x32xf32>
    %4 = vector.shape_cast %3 : vector<1x2x8x32xf32> to vector<2x8x32xf32>
    %5 = vector.shape_cast %4 : vector<2x8x32xf32> to vector<16x32xf32>
    %c2 = arith.constant 2 : index
    %c0_6 = arith.constant 0 : index
    %c0_7 = arith.constant 0 : index
    %c0_8 = arith.constant 0 : index
    %6 = vector.load %arg1[%c2, %c0_6, %c0_7, %c0_8] : memref<3x2x8x32xf32, #tpu.memory_space<vmem>>, vector<1x2x8x32xf32>
    %7 = vector.shape_cast %6 : vector<1x2x8x32xf32> to vector<2x8x32xf32>
    %8 = vector.shape_cast %7 : vector<2x8x32xf32> to vector<16x32xf32>
    %c0_9 = arith.constant 0 : index
    %c0_10 = arith.constant 0 : index
    %c0_11 = arith.constant 0 : index
    %9 = vector.load %arg2[%c0_9, %c0_10, %c0_11] : memref<3x32x128xf32, #tpu.memory_space<vmem>>, vector<1x32x128xf32>
    %10 = vector.shape_cast %9 : vector<1x32x128xf32> to vector<32x128xf32>
    %cst = arith.constant dense<0.000000e+00> : vector<16x128xf32>
    %11 = tpu.matmul %2, %10, %cst {dimension_numbers = #tpu.dot_dimension_numbers<[1], [0], [0], [1], [0, 0, 1, 1], [], []>} : vector<16x32xf32>, vector<32x128xf32>, vector<16x128xf32> -> vector<16x128xf32>
    %c0_12 = arith.constant 0 : index
    %c0_13 = arith.constant 0 : index
    %c0_14 = arith.constant 0 : index
    %12 = vector.load %arg3[%c0_12, %c0_13, %c0_14] : memref<3x1x128xf32, #tpu.memory_space<vmem>>, vector<1x1x128xf32>
    %13 = vector.shape_cast %12 : vector<1x1x128xf32> to vector<1x128xf32>
    %14 = vector.broadcast %13 : vector<1x128xf32> to vector<16x128xf32>
    %15 = arith.addf %11, %14 : vector<16x128xf32>
    %c1_15 = arith.constant 1 : index
    %c0_16 = arith.constant 0 : index
    %c0_17 = arith.constant 0 : index
    %16 = vector.load %arg2[%c1_15, %c0_16, %c0_17] : memref<3x32x128xf32, #tpu.memory_space<vmem>>, vector<1x32x128xf32>
    %17 = vector.shape_cast %16 : vector<1x32x128xf32> to vector<32x128xf32>
    %cst_18 = arith.constant dense<0.000000e+00> : vector<16x128xf32>
    %18 = tpu.matmul %5, %17, %cst_18 {dimension_numbers = #tpu.dot_dimension_numbers<[1], [0], [0], [1], [0, 0, 1, 1], [], []>} : vector<16x32xf32>, vector<32x128xf32>, vector<16x128xf32> -> vector<16x128xf32>
    %c1_19 = arith.constant 1 : index
    %c0_20 = arith.constant 0 : index
    %c0_21 = arith.constant 0 : index
    %19 = vector.load %arg3[%c1_19, %c0_20, %c0_21] : memref<3x1x128xf32, #tpu.memory_space<vmem>>, vector<1x1x128xf32>
    %20 = vector.shape_cast %19 : vector<1x1x128xf32> to vector<1x128xf32>
    %21 = vector.broadcast %20 : vector<1x128xf32> to vector<16x128xf32>
    %22 = arith.addf %18, %21 : vector<16x128xf32>
    %c2_22 = arith.constant 2 : index
    %c0_23 = arith.constant 0 : index
    %c0_24 = arith.constant 0 : index
    %23 = vector.load %arg2[%c2_22, %c0_23, %c0_24] : memref<3x32x128xf32, #tpu.memory_space<vmem>>, vector<1x32x128xf32>
    %24 = vector.shape_cast %23 : vector<1x32x128xf32> to vector<32x128xf32>
    %cst_25 = arith.constant dense<0.000000e+00> : vector<16x128xf32>
    %25 = tpu.matmul %8, %24, %cst_25 {dimension_numbers = #tpu.dot_dimension_numbers<[1], [0], [0], [1], [0, 0, 1, 1], [], []>} : vector<16x32xf32>, vector<32x128xf32>, vector<16x128xf32> -> vector<16x128xf32>
    %c2_26 = arith.constant 2 : index
    %c0_27 = arith.constant 0 : index
    %c0_28 = arith.constant 0 : index
    %26 = vector.load %arg3[%c2_26, %c0_27, %c0_28] : memref<3x1x128xf32, #tpu.memory_space<vmem>>, vector<1x1x128xf32>
    %27 = vector.shape_cast %26 : vector<1x1x128xf32> to vector<1x128xf32>
    %28 = vector.broadcast %27 : vector<1x128xf32> to vector<16x128xf32>
    %29 = arith.addf %25, %28 : vector<16x128xf32>
    %cst_29 = arith.constant 0.000000e+00 : f32
    %30 = vector.broadcast %cst_29 : f32 to vector<2x8x32xf32>
    %c0_30 = arith.constant 0 : index
    %c0_31 = arith.constant 0 : index
    %31 = vector.load %arg4[%c0_30, %c0_31] : memref<1x32xf32, #tpu.memory_space<vmem>>, vector<1x32xf32>
    %32 = vector.shape_cast %31 : vector<1x32xf32> to vector<1x1x32xf32>
    %33 = vector.broadcast %32 : vector<1x1x32xf32> to vector<2x8x32xf32>
    %34 = arith.addf %30, %33 : vector<2x8x32xf32>
    %35 = vector.extract_strided_slice %15 {offsets = [0, 0], sizes = [16, 32], strides = [1, 1]} : vector<16x128xf32> to vector<16x32xf32>
    %36 = vector.shape_cast %35 : vector<16x32xf32> to vector<2x8x32xf32>
    %37 = vector.extract_strided_slice %22 {offsets = [0, 0], sizes = [16, 32], strides = [1, 1]} : vector<16x128xf32> to vector<16x32xf32>
    %38 = vector.shape_cast %37 : vector<16x32xf32> to vector<2x8x32xf32>
    %39 = vector.extract_strided_slice %29 {offsets = [0, 0], sizes = [16, 32], strides = [1, 1]} : vector<16x128xf32> to vector<16x32xf32>
    %40 = vector.shape_cast %39 : vector<16x32xf32> to vector<2x8x32xf32>
    "tpu.trace_start"() <{level = 10 : i32, message = "bqd,bkd->bqk"}> : () -> ()
    %cst_32 = arith.constant dense<0.000000e+00> : vector<2x8x8xf32>
    %41 = tpu.matmul %36, %38, %cst_32 {dimension_numbers = #tpu.dot_dimension_numbers<[2], [2], [1], [1], [0, 0, 0, 1, 1, 1], [0], [0]>} : vector<2x8x32xf32>, vector<2x8x32xf32>, vector<2x8x8xf32> -> vector<2x8x8xf32>
    "tpu.trace_stop"() : () -> ()
    "tpu.trace_start"() <{level = 10 : i32, message = "bqk,bkd->bqd"}> : () -> ()
    %cst_33 = arith.constant dense<0.000000e+00> : vector<2x8x32xf32>
    %42 = tpu.matmul %41, %40, %cst_33 {dimension_numbers = #tpu.dot_dimension_numbers<[2], [1], [1], [2], [0, 0, 0, 1, 1, 2], [0], [0]>} : vector<2x8x8xf32>, vector<2x8x32xf32>, vector<2x8x32xf32> -> vector<2x8x32xf32>
    "tpu.trace_stop"() : () -> ()
    %43 = arith.addf %34, %42 : vector<2x8x32xf32>
    %44 = vector.extract_strided_slice %15 {offsets = [0, 32], sizes = [16, 32], strides = [1, 1]} : vector<16x128xf32> to vector<16x32xf32>
    %45 = vector.shape_cast %44 : vector<16x32xf32> to vector<2x8x32xf32>
    %46 = vector.extract_strided_slice %22 {offsets = [0, 32], sizes = [16, 32], strides = [1, 1]} : vector<16x128xf32> to vector<16x32xf32>
    %47 = vector.shape_cast %46 : vector<16x32xf32> to vector<2x8x32xf32>
    %48 = vector.extract_strided_slice %29 {offsets = [0, 32], sizes = [16, 32], strides = [1, 1]} : vector<16x128xf32> to vector<16x32xf32>
    %49 = vector.shape_cast %48 : vector<16x32xf32> to vector<2x8x32xf32>
    "tpu.trace_start"() <{level = 10 : i32, message = "bqd,bkd->bqk"}> : () -> ()
    %cst_34 = arith.constant dense<0.000000e+00> : vector<2x8x8xf32>
    %50 = tpu.matmul %45, %47, %cst_34 {dimension_numbers = #tpu.dot_dimension_numbers<[2], [2], [1], [1], [0, 0, 0, 1, 1, 1], [0], [0]>} : vector<2x8x32xf32>, vector<2x8x32xf32>, vector<2x8x8xf32> -> vector<2x8x8xf32>
    "tpu.trace_stop"() : () -> ()
    "tpu.trace_start"() <{level = 10 : i32, message = "bqk,bkd->bqd"}> : () -> ()
    %cst_35 = arith.constant dense<0.000000e+00> : vector<2x8x32xf32>
    %51 = tpu.matmul %50, %49, %cst_35 {dimension_numbers = #tpu.dot_dimension_numbers<[2], [1], [1], [2], [0, 0, 0, 1, 1, 2], [0], [0]>} : vector<2x8x8xf32>, vector<2x8x32xf32>, vector<2x8x32xf32> -> vector<2x8x32xf32>
    "tpu.trace_stop"() : () -> ()
    %52 = arith.addf %43, %51 : vector<2x8x32xf32>
    %53 = vector.extract_strided_slice %15 {offsets = [0, 64], sizes = [16, 32], strides = [1, 1]} : vector<16x128xf32> to vector<16x32xf32>
    %54 = vector.shape_cast %53 : vector<16x32xf32> to vector<2x8x32xf32>
    %55 = vector.extract_strided_slice %22 {offsets = [0, 64], sizes = [16, 32], strides = [1, 1]} : vector<16x128xf32> to vector<16x32xf32>
    %56 = vector.shape_cast %55 : vector<16x32xf32> to vector<2x8x32xf32>
    %57 = vector.extract_strided_slice %29 {offsets = [0, 64], sizes = [16, 32], strides = [1, 1]} : vector<16x128xf32> to vector<16x32xf32>
    %58 = vector.shape_cast %57 : vector<16x32xf32> to vector<2x8x32xf32>
    "tpu.trace_start"() <{level = 10 : i32, message = "bqd,bkd->bqk"}> : () -> ()
    %cst_36 = arith.constant dense<0.000000e+00> : vector<2x8x8xf32>
    %59 = tpu.matmul %54, %56, %cst_36 {dimension_numbers = #tpu.dot_dimension_numbers<[2], [2], [1], [1], [0, 0, 0, 1, 1, 1], [0], [0]>} : vector<2x8x32xf32>, vector<2x8x32xf32>, vector<2x8x8xf32> -> vector<2x8x8xf32>
    "tpu.trace_stop"() : () -> ()
    "tpu.trace_start"() <{level = 10 : i32, message = "bqk,bkd->bqd"}> : () -> ()
    %cst_37 = arith.constant dense<0.000000e+00> : vector<2x8x32xf32>
    %60 = tpu.matmul %59, %58, %cst_37 {dimension_numbers = #tpu.dot_dimension_numbers<[2], [1], [1], [2], [0, 0, 0, 1, 1, 2], [0], [0]>} : vector<2x8x8xf32>, vector<2x8x32xf32>, vector<2x8x32xf32> -> vector<2x8x32xf32>
    "tpu.trace_stop"() : () -> ()
    %61 = arith.addf %52, %60 : vector<2x8x32xf32>
    %62 = vector.extract_strided_slice %15 {offsets = [0, 96], sizes = [16, 32], strides = [1, 1]} : vector<16x128xf32> to vector<16x32xf32>
    %63 = vector.shape_cast %62 : vector<16x32xf32> to vector<2x8x32xf32>
    %64 = vector.extract_strided_slice %22 {offsets = [0, 96], sizes = [16, 32], strides = [1, 1]} : vector<16x128xf32> to vector<16x32xf32>
    %65 = vector.shape_cast %64 : vector<16x32xf32> to vector<2x8x32xf32>
    %66 = vector.extract_strided_slice %29 {offsets = [0, 96], sizes = [16, 32], strides = [1, 1]} : vector<16x128xf32> to vector<16x32xf32>
    %67 = vector.shape_cast %66 : vector<16x32xf32> to vector<2x8x32xf32>
    "tpu.trace_start"() <{level = 10 : i32, message = "bqd,bkd->bqk"}> : () -> ()
    %cst_38 = arith.constant dense<0.000000e+00> : vector<2x8x8xf32>
    %68 = tpu.matmul %63, %65, %cst_38 {dimension_numbers = #tpu.dot_dimension_numbers<[2], [2], [1], [1], [0, 0, 0, 1, 1, 1], [0], [0]>} : vector<2x8x32xf32>, vector<2x8x32xf32>, vector<2x8x8xf32> -> vector<2x8x8xf32>
    "tpu.trace_stop"() : () -> ()
    "tpu.trace_start"() <{level = 10 : i32, message = "bqk,bkd->bqd"}> : () -> ()
    %cst_39 = arith.constant dense<0.000000e+00> : vector<2x8x32xf32>
    %69 = tpu.matmul %68, %67, %cst_39 {dimension_numbers = #tpu.dot_dimension_numbers<[2], [1], [1], [2], [0, 0, 0, 1, 1, 2], [0], [0]>} : vector<2x8x8xf32>, vector<2x8x32xf32>, vector<2x8x32xf32> -> vector<2x8x32xf32>
    "tpu.trace_stop"() : () -> ()
    %70 = arith.addf %61, %69 : vector<2x8x32xf32>
    %c0_40 = arith.constant 0 : index
    %c0_41 = arith.constant 0 : index
    %c0_42 = arith.constant 0 : index
    %71 = vector.load %arg5[%c0_40, %c0_41, %c0_42] : memref<2x8x32xf32, #tpu.memory_space<vmem>>, vector<2x8x32xf32>
    tpu.vector_store %arg5[%c0_40, %c0_41, %c0_42], %70 {strides = array<i32>} : memref<2x8x32xf32, #tpu.memory_space<vmem>>, vector<2x8x32xf32>,
    return
  }
  func.func @transform_0(%arg0: i32) -> (i32, i32, i32, i32) {
    %c0_i32 = arith.constant 0 : i32
    %c0_i32_0 = arith.constant 0 : i32
    %c0_i32_1 = arith.constant 0 : i32
    %c0_i32_2 = arith.constant 0 : i32
    return %c0_i32, %arg0, %c0_i32_0, %c0_i32_1 : i32, i32, i32, i32
  }
  func.func @transform_1(%arg0: i32) -> (i32, i32, i32) {
    %c0_i32 = arith.constant 0 : i32
    %c0_i32_0 = arith.constant 0 : i32
    %c0_i32_1 = arith.constant 0 : i32
    %c0_i32_2 = arith.constant 0 : i32
    return %c0_i32, %c0_i32_0, %c0_i32_1 : i32, i32, i32
  }
  func.func @transform_2(%arg0: i32) -> (i32, i32, i32) {
    %c0_i32 = arith.constant 0 : i32
    %c0_i32_0 = arith.constant 0 : i32
    %c0_i32_1 = arith.constant 0 : i32
    %c0_i32_2 = arith.constant 0 : i32
    return %c0_i32, %c0_i32_0, %c0_i32_1 : i32, i32, i32
  }
  func.func @transform_3(%arg0: i32) -> (i32, i32) {
    %c0_i32 = arith.constant 0 : i32
    %c0_i32_0 = arith.constant 0 : i32
    %c0_i32_1 = arith.constant 0 : i32
    return %c0_i32, %c0_i32_0 : i32, i32
  }
  func.func @transform_4(%arg0: i32) -> (i32, i32, i32) {
    %c0_i32 = arith.constant 0 : i32
    %c0_i32_0 = arith.constant 0 : i32
    %c0_i32_1 = arith.constant 0 : i32
    return %arg0, %c0_i32, %c0_i32_0 : i32, i32, i32
  }
}

</mosaic_0001>

<llo_original>
// kernel: tpu_custom_call.1
$region0: #{tpu_custom_call.1}
  #allocation0 [shape = 'u32[]', space=smem, size = 0x4, offset = 0x4, fixed_abs, tag = 'smem constant byte address 0x4 - core index']
  #allocation1 [shape = 'u32[144,128]{1,0:T(1,128)}', space=vmem, size = 0x12000, scoped, tag = 'internal scratch']
  %s0 = inlined_call_operand.hbm [shape: f32[3,2,8,32], index: 0, kind: input, shape index: {}]
  %s1 = inlined_call_operand.hbm [shape: f32[3,32,128], index: 1, kind: input, shape index: {}]
  %s2 = inlined_call_operand.vmem [shape: f32[3,1,128], index: 2, kind: input, shape index: {}]
  %s3 = inlined_call_operand.vmem [shape: f32[1,32], index: 3, kind: input, shape index: {}]
  %s4 = inlined_call_operand.hbm [shape: f32[2,8,32], index: 4, kind: output, shape index: {}]
  %s5 = sld [smem:[#allocation0]]
  $region34: #{tpu_custom_call.1} parent=0
    _
  %s7 = ssub.s32 1, %s5
  %s8 = scalar_select 0, %s7, %s5
  $region1: #{tpu_custom_call.1} parent=0
    #allocation2 [shape = 'u8[24576]{0}', space=vmem, size = 0x6000, scoped, tag = 'input window, operand 0, single buffered']
    #allocation3 [shape = 's32[1]{0}', space=sflag, size = 0x4, scoped, tag = 'scoped memory for tpu_custom_call.1']
    #allocation4 [shape = 's32[1]{0}', space=sflag, size = 0x4, scoped, tag = 'scoped memory for tpu_custom_call.1']
    #allocation5 [shape = 'u8[49152]{0}', space=vmem, size = 0xc000, scoped, tag = 'input window, operand 1, single buffered']
    #allocation6 [shape = 's32[1]{0}', space=sflag, size = 0x4, scoped, tag = 'scoped memory for tpu_custom_call.1']
    #allocation7 [shape = 'u8[8192]{0}', space=vmem, size = 0x2000, scoped, tag = 'output window, operand 0, single buffered']
    %9 = vsyncpa [#allocation3], 0
    %10 = vsyncpa [#allocation6], 0
    %11 = vsyncpa [#allocation4], 0
    // Predicated region
    $region2: #{tpu_custom_call.1} parent=1 // pred_check
      _
    $region3: #{tpu_custom_call.1} parent=1 // pred_check_branch
      %13 = sbr.rel (0) target = $region5
    $region4: #{tpu_custom_call.1} parent=1 // pred_region
      %s15 = ssub.s32 768, 768
      %16 = vsyncadd [#allocation3], %s15
      %s17 = sshll.u32 [#allocation2], 4
      %s18 = int_to_ptr.vmem [resolvable:$true] %s17
      %23 = dma.hbm_to_vmem [thread:$0]  %s0, 768, %s18, [#allocation3], 128, 128, 8
    $region5: #{tpu_custom_call.1} parent=1 // pred_fallthru
      _
    // Predicated region
    $region6: #{tpu_custom_call.1} parent=1 // pred_check
      _
    $region7: #{tpu_custom_call.1} parent=1 // pred_check_branch
      %25 = sbr.rel (0) target = $region9
    $region8: #{tpu_custom_call.1} parent=1 // pred_region
      %s27 = ssub.s32 1536, 1536
      %28 = vsyncadd [#allocation6], %s27
      %s29 = sshll.u32 [#allocation5], 4
      %s30 = int_to_ptr.vmem [resolvable:$true] %s29
      %35 = dma.hbm_to_vmem [thread:$0]  %s1, 1536, %s30, [#allocation6], 128, 128, 8
    $region9: #{tpu_custom_call.1} parent=1 // pred_fallthru
      _
    // Predicated region
    $region10: #{tpu_custom_call.1} parent=1 // pred_check
      _
    $region11: #{tpu_custom_call.1} parent=1 // pred_check_branch
      %37 = sbr.rel (0) target = $region13
    $region12: #{tpu_custom_call.1} parent=1 // pred_region
      _
    $region13: #{tpu_custom_call.1} parent=1 // pred_fallthru
      _
    // Predicated region
    $region14: #{tpu_custom_call.1} parent=1 // pred_check
      _
    $region15: #{tpu_custom_call.1} parent=1 // pred_check_branch
      %39 = sbr.rel (0) target = $region17
    $region16: #{tpu_custom_call.1} parent=1 // pred_region
      _
    $region17: #{tpu_custom_call.1} parent=1 // pred_fallthru
      _
    // Predicated region
    $region18: #{tpu_custom_call.1} parent=1 // pred_check
      _
    $region19: #{tpu_custom_call.1} parent=1 // pred_check_branch
      %41 = sbr.rel (0) target = $region21
    $region20: #{tpu_custom_call.1} parent=1 // pred_region
      %42 = dma.done [#allocation3], 768
    $region21: #{tpu_custom_call.1} parent=1 // pred_fallthru
      _
    // Predicated region
    $region22: #{tpu_custom_call.1} parent=1 // pred_check
      _
    $region23: #{tpu_custom_call.1} parent=1 // pred_check_branch
      %44 = sbr.rel (0) target = $region25
    $region24: #{tpu_custom_call.1} parent=1 // pred_region
      %45 = dma.done [#allocation6], 1536
    $region25: #{tpu_custom_call.1} parent=1 // pred_fallthru
      _
    %v46 = vld [vmem:[#allocation2] sm:$0xff]
    %v47 = vld [vmem:[#allocation2 + $0x8] sm:$0xff]
    %s48 = scalar_lea.vmem [#allocation2], 16
    %v49 = vld [vmem:[%s48] sm:$0xff]
    %v50 = vld [vmem:[%s48 + $0x8] sm:$0xff]
    %s51 = scalar_lea.vmem [#allocation2], 32
    %v52 = vld [vmem:[%s51] sm:$0xff]
    %v53 = vld [vmem:[%s51 + $0x8] sm:$0xff]
    %v54 = vld [vmem:[#allocation5] sm:$0xff]
    %v55 = vld [vmem:[#allocation5 + $0x8] sm:$0xff]
    %v56 = vld [vmem:[#allocation5 + $0x10] sm:$0xff]
    %v57 = vld [vmem:[#allocation5 + $0x18] sm:$0xff]
    %v58 = vld [vmem:[%s2] sm:$0x1]
    %v60 = vlaneseq
    %v61 = vshrl.u32 %v60, 7
    %v62 = vsub.s32 0, %v61
    %v63 = vrot.slane %v58, %v62
    %vm65 = vcmask 261120
    %v67 = vsel %vm65, %v46, 0
    %v70 = vsel %vm65, %v47, 0
    %72 = vmatprep.subr.mxu0 0.0
    %73 = vmatpush1.msra.mxu0 %v54
    %74 = vmatprep.subr.mxu0 0.0
    %75 = vmatpush1.msra.mxu0 %v55
    %76 = vmatprep.subr.mxu0 0.0
    %77 = vmatpush1.msra.mxu0 %v56
    %78 = vmatprep.subr.mxu0 0.0
    %79 = vmatpush1.msra.mxu0 %v57
    %80 = vmatprep.subr.mxu0 0.0
    %81 = vmatpush1.msra.mxu0 0.0
    %82 = vmatprep.subr.mxu0 0.0
    %83 = vmatpush1.msra.mxu0 0.0
    %84 = vmatprep.subr.mxu0 0.0
    %85 = vmatpush1.msra.mxu0 0.0
    %86 = vmatprep.subr.mxu0 0.0
    %87 = vmatpush1.msra.mxu0 0.0
    %88 = vmatprep.subr.mxu0 0.0
    %89 = vmatpush1.msra.mxu0 0.0
    %90 = vmatprep.subr.mxu0 0.0
    %91 = vmatpush1.msra.mxu0 0.0
    %92 = vmatprep.subr.mxu0 0.0
    %93 = vmatpush1.msra.mxu0 0.0
    %94 = vmatprep.subr.mxu0 0.0
    %95 = vmatpush1.msra.mxu0 0.0
    %96 = vmatprep.subr.mxu0 0.0
    %97 = vmatpush1.msra.mxu0 0.0
    %98 = vmatprep.subr.mxu0 0.0
    %99 = vmatpush1.msra.mxu0 0.0
    %100 = vmatprep.subr.mxu0 0.0
    %101 = vmatpush1.msra.mxu0 0.0
    %102 = vmatprep.subr.mxu0 0.0
    %103 = vmatpush1.msra.mxu0 0.0
    %104 = vmatprep.subr.mxu0 0.0
    %105 = vmatpush1.msra.mxu0 0.0
    %106 = vmatprep.subr.mxu0 0.0
    %107 = vmatpush1.msra.mxu0 0.0
    %108 = vmatprep.subr.mxu0 0.0
    %109 = vmatpush1.msra.mxu0 0.0
    %110 = vmatprep.subr.mxu0 0.0
    %111 = vmatpush1.msra.mxu0 0.0
    %112 = vmatprep.subr.mxu0 0.0
    %113 = vmatpush1.msra.mxu0 0.0
    %114 = vmatprep.subr.mxu0 0.0
    %115 = vmatpush1.msra.mxu0 0.0
    %116 = vmatprep.subr.mxu0 0.0
    %117 = vmatpush1.msra.mxu0 0.0
    %118 = vmatprep.subr.mxu0 0.0
    %119 = vmatpush1.msra.mxu0 0.0
    %120 = vmatprep.subr.mxu0 0.0
    %121 = vmatpush1.msra.mxu0 0.0
    %122 = vmatprep.subr.mxu0 0.0
    %123 = vmatpush1.msra.mxu0 0.0
    %124 = vmatprep.subr.mxu0 0.0
    %125 = vmatpush1.msra.mxu0 0.0
    %126 = vmatprep.subr.mxu0 0.0
    %127 = vmatpush1.msra.mxu0 0.0
    %128 = vmatprep.subr.mxu0 0.0
    %129 = vmatpush1.msra.mxu0 0.0
    %130 = vmatprep.subr.mxu0 0.0
    %131 = vmatpush1.msra.mxu0 0.0
    %132 = vmatprep.subr.mxu0 0.0
    %133 = vmatpush1.msra.mxu0 0.0
    %134 = vmatprep.subr.mxu0 0.0
    %135 = vmatpush1.msra.mxu0 0.0
    %136 = vmatprep.mubr.f32.mxu0 0.0
    %137 = vmatmul.mubr.f32.gmra.mrb[0].mxu0 %v67
    %v138 = vpop.f32.mrb[0].mxu0
    %v139 = vadd.f32 %v63, %v138
    %v140 = vpop.f32.mrb[0].mxu0
    %141 = vmatprep.mubr.f32.mxu0 0.0
    %142 = vmatmul.mubr.f32.gmra.mrb[0].mxu0 %v70
    %v143 = vpop.f32.mrb[0].mxu0
    %v144 = vadd.f32 %v63, %v143
    %v145 = vpop.f32.mrb[0].mxu0
    %146 = vdwg.mxu0
    %s147 = scalar_lea.vmem [#allocation5], 32
    %v148 = vld [vmem:[%s147] sm:$0xff]
    %v149 = vld [vmem:[%s147 + $0x8] sm:$0xff]
    %v150 = vld [vmem:[%s147 + $0x10] sm:$0xff]
    %v151 = vld [vmem:[%s147 + $0x18] sm:$0xff]
    %s152 = scalar_lea.vmem %s2, 1
    %v153 = vld [vmem:[%s152] sm:$0x1]
    %v155 = vlaneseq
    %v156 = vshrl.u32 %v155, 7
    %v157 = vsub.s32 0, %v156
    %v158 = vrot.slane %v153, %v157
    %v161 = vsel %vm65, %v49, 0
    %v164 = vsel %vm65, %v50, 0
    %166 = vmatprep.subr.mxu0 0.0
    %167 = vmatpush1.msra.mxu0 %v148
    %168 = vmatprep.subr.mxu0 0.0
    %169 = vmatpush1.msra.mxu0 %v149
    %170 = vmatprep.subr.mxu0 0.0
    %171 = vmatpush1.msra.mxu0 %v150
    %172 = vmatprep.subr.mxu0 0.0
    %173 = vmatpush1.msra.mxu0 %v151
    %174 = vmatprep.subr.mxu0 0.0
    %175 = vmatpush1.msra.mxu0 0.0
    %176 = vmatprep.subr.mxu0 0.0
    %177 = vmatpush1.msra.mxu0 0.0
    %178 = vmatprep.subr.mxu0 0.0
    %179 = vmatpush1.msra.mxu0 0.0
    %180 = vmatprep.subr.mxu0 0.0
    %181 = vmatpush1.msra.mxu0 0.0
    %182 = vmatprep.subr.mxu0 0.0
    %183 = vmatpush1.msra.mxu0 0.0
    %184 = vmatprep.subr.mxu0 0.0
    %185 = vmatpush1.msra.mxu0 0.0
    %186 = vmatprep.subr.mxu0 0.0
    %187 = vmatpush1.msra.mxu0 0.0
    %188 = vmatprep.subr.mxu0 0.0
    %189 = vmatpush1.msra.mxu0 0.0
    %190 = vmatprep.subr.mxu0 0.0
    %191 = vmatpush1.msra.mxu0 0.0
    %192 = vmatprep.subr.mxu0 0.0
    %193 = vmatpush1.msra.mxu0 0.0
    %194 = vmatprep.subr.mxu0 0.0
    %195 = vmatpush1.msra.mxu0 0.0
    %196 = vmatprep.subr.mxu0 0.0
    %197 = vmatpush1.msra.mxu0 0.0
    %198 = vmatprep.subr.mxu0 0.0
    %199 = vmatpush1.msra.mxu0 0.0
    %200 = vmatprep.subr.mxu0 0.0
    %201 = vmatpush1.msra.mxu0 0.0
    %202 = vmatprep.subr.mxu0 0.0
    %203 = vmatpush1.msra.mxu0 0.0
    %204 = vmatprep.subr.mxu0 0.0
    %205 = vmatpush1.msra.mxu0 0.0
    %206 = vmatprep.subr.mxu0 0.0
    %207 = vmatpush1.msra.mxu0 0.0
    %208 = vmatprep.subr.mxu0 0.0
    %209 = vmatpush1.msra.mxu0 0.0
    %210 = vmatprep.subr.mxu0 0.0
    %211 = vmatpush1.msra.mxu0 0.0
    %212 = vmatprep.subr.mxu0 0.0
    %213 = vmatpush1.msra.mxu0 0.0
    %214 = vmatprep.subr.mxu0 0.0
    %215 = vmatpush1.msra.mxu0 0.0
    %216 = vmatprep.subr.mxu0 0.0
    %217 = vmatpush1.msra.mxu0 0.0
    %218 = vmatprep.subr.mxu0 0.0
    %219 = vmatpush1.msra.mxu0 0.0
    %220 = vmatprep.subr.mxu0 0.0
    %221 = vmatpush1.msra.mxu0 0.0
    %222 = vmatprep.subr.mxu0 0.0
    %223 = vmatpush1.msra.mxu0 0.0
    %224 = vmatprep.subr.mxu0 0.0
    %225 = vmatpush1.msra.mxu0 0.0
    %226 = vmatprep.subr.mxu0 0.0
    %227 = vmatpush1.msra.mxu0 0.0
    %228 = vmatprep.subr.mxu0 0.0
    %229 = vmatpush1.msra.mxu0 0.0
    %230 = vmatprep.mubr.f32.mxu0 0.0
    %231 = vmatmul.mubr.f32.gmra.mrb[0].mxu0 %v161
    %v232 = vpop.f32.mrb[0].mxu0
    %v233 = vadd.f32 %v158, %v232
    %v234 = vpop.f32.mrb[0].mxu0
    %235 = vmatprep.mubr.f32.mxu0 0.0
    %236 = vmatmul.mubr.f32.gmra.mrb[0].mxu0 %v164
    %v237 = vpop.f32.mrb[0].mxu0
    %v238 = vadd.f32 %v158, %v237
    %v239 = vpop.f32.mrb[0].mxu0
    %240 = vdwg.mxu0
    %s241 = scalar_lea.vmem [#allocation5], 64
    %v242 = vld [vmem:[%s241] sm:$0xff]
    %v243 = vld [vmem:[%s241 + $0x8] sm:$0xff]
    %v244 = vld [vmem:[%s241 + $0x10] sm:$0xff]
    %v245 = vld [vmem:[%s241 + $0x18] sm:$0xff]
    %s246 = scalar_lea.vmem %s2, 2
    %v247 = vld [vmem:[%s246] sm:$0x1]
    %v249 = vlaneseq
    %v250 = vshrl.u32 %v249, 7
    %v251 = vsub.s32 0, %v250
    %v252 = vrot.slane %v247, %v251
    %v255 = vsel %vm65, %v52, 0
    %v258 = vsel %vm65, %v53, 0
    %260 = vmatprep.subr.mxu0 0.0
    %261 = vmatpush1.msra.mxu0 %v242
    %262 = vmatprep.subr.mxu0 0.0
    %263 = vmatpush1.msra.mxu0 %v243
    %264 = vmatprep.subr.mxu0 0.0
    %265 = vmatpush1.msra.mxu0 %v244
    %266 = vmatprep.subr.mxu0 0.0
    %267 = vmatpush1.msra.mxu0 %v245
    %268 = vmatprep.subr.mxu0 0.0
    %269 = vmatpush1.msra.mxu0 0.0
    %270 = vmatprep.subr.mxu0 0.0
    %271 = vmatpush1.msra.mxu0 0.0
    %272 = vmatprep.subr.mxu0 0.0
    %273 = vmatpush1.msra.mxu0 0.0
    %274 = vmatprep.subr.mxu0 0.0
    %275 = vmatpush1.msra.mxu0 0.0
    %276 = vmatprep.subr.mxu0 0.0
    %277 = vmatpush1.msra.mxu0 0.0
    %278 = vmatprep.subr.mxu0 0.0
    %279 = vmatpush1.msra.mxu0 0.0
    %280 = vmatprep.subr.mxu0 0.0
    %281 = vmatpush1.msra.mxu0 0.0
    %282 = vmatprep.subr.mxu0 0.0
    %283 = vmatpush1.msra.mxu0 0.0
    %284 = vmatprep.subr.mxu0 0.0
    %285 = vmatpush1.msra.mxu0 0.0
    %286 = vmatprep.subr.mxu0 0.0
    %287 = vmatpush1.msra.mxu0 0.0
    %288 = vmatprep.subr.mxu0 0.0
    %289 = vmatpush1.msra.mxu0 0.0
    %290 = vmatprep.subr.mxu0 0.0
    %291 = vmatpush1.msra.mxu0 0.0
    %292 = vmatprep.subr.mxu0 0.0
    %293 = vmatpush1.msra.mxu0 0.0
    %294 = vmatprep.subr.mxu0 0.0
    %295 = vmatpush1.msra.mxu0 0.0
    %296 = vmatprep.subr.mxu0 0.0
    %297 = vmatpush1.msra.mxu0 0.0
    %298 = vmatprep.subr.mxu0 0.0
    %299 = vmatpush1.msra.mxu0 0.0
    %300 = vmatprep.subr.mxu0 0.0
    %301 = vmatpush1.msra.mxu0 0.0
    %302 = vmatprep.subr.mxu0 0.0
    %303 = vmatpush1.msra.mxu0 0.0
    %304 = vmatprep.subr.mxu0 0.0
    %305 = vmatpush1.msra.mxu0 0.0
    %306 = vmatprep.subr.mxu0 0.0
    %307 = vmatpush1.msra.mxu0 0.0
    %308 = vmatprep.subr.mxu0 0.0
    %309 = vmatpush1.msra.mxu0 0.0
    %310 = vmatprep.subr.mxu0 0.0
    %311 = vmatpush1.msra.mxu0 0.0
    %312 = vmatprep.subr.mxu0 0.0
    %313 = vmatpush1.msra.mxu0 0.0
    %314 = vmatprep.subr.mxu0 0.0
    %315 = vmatpush1.msra.mxu0 0.0
    %316 = vmatprep.subr.mxu0 0.0
    %317 = vmatpush1.msra.mxu0 0.0
    %318 = vmatprep.subr.mxu0 0.0
    %319 = vmatpush1.msra.mxu0 0.0
    %320 = vmatprep.subr.mxu0 0.0
    %321 = vmatpush1.msra.mxu0 0.0
    %322 = vmatprep.subr.mxu0 0.0
    %323 = vmatpush1.msra.mxu0 0.0
    %324 = vmatprep.mubr.f32.mxu0 0.0
    %325 = vmatmul.mubr.f32.gmra.mrb[0].mxu0 %v255
    %v326 = vpop.f32.mrb[0].mxu0
    %v327 = vadd.f32 %v252, %v326
    %v328 = vpop.f32.mrb[0].mxu0
    %329 = vmatprep.mubr.f32.mxu0 0.0
    %330 = vmatmul.mubr.f32.gmra.mrb[0].mxu0 %v258
    %v331 = vpop.f32.mrb[0].mxu0
    %v332 = vadd.f32 %v252, %v331
    %v333 = vpop.f32.mrb[0].mxu0
    %334 = vdwg.mxu0
    %v335 = vld [vmem:[%s3] sm:$0x1]
    %v337 = vlaneseq
    %v338 = vshrl.u32 %v337, 7
    %v339 = vsub.s32 0, %v338
    %v340 = vrot.slane %v335, %v339
    %v342 = vadd.f32 %v340, 0.0
    %v344 = vsel %vm65, %v139, 0
    %v347 = vsel %vm65, %v233, 0
    %349 = vmatprep.subr.mxu0 0.0
    %350 = vmatpush1.xpose.msra.mxu0 %v347
    %351 = vmatprep.subr.mxu0 0.0
    %352 = vmatpush1.xpose.msra.mxu0 0.0
    %353 = vmatprep.subr.mxu0 0.0
    %354 = vmatpush1.xpose.msra.mxu0 0.0
    %355 = vmatprep.subr.mxu0 0.0
    %356 = vmatpush1.xpose.msra.mxu0 0.0
    %357 = vmatprep.subr.mxu0 0.0
    %358 = vmatpush1.xpose.msra.mxu0 0.0
    %359 = vmatprep.subr.mxu0 0.0
    %360 = vmatpush1.xpose.msra.mxu0 0.0
    %361 = vmatprep.subr.mxu0 0.0
    %362 = vmatpush1.xpose.msra.mxu0 0.0
    %363 = vmatprep.subr.mxu0 0.0
    %364 = vmatpush1.xpose.msra.mxu0 0.0
    %365 = vmatprep.subr.mxu0 0.0
    %366 = vmatpush1.xpose.msra.mxu0 0.0
    %367 = vmatprep.subr.mxu0 0.0
    %368 = vmatpush1.xpose.msra.mxu0 0.0
    %369 = vmatprep.subr.mxu0 0.0
    %370 = vmatpush1.xpose.msra.mxu0 0.0
    %371 = vmatprep.subr.mxu0 0.0
    %372 = vmatpush1.xpose.msra.mxu0 0.0
    %373 = vmatprep.subr.mxu0 0.0
    %374 = vmatpush1.xpose.msra.mxu0 0.0
    %375 = vmatprep.subr.mxu0 0.0
    %376 = vmatpush1.xpose.msra.mxu0 0.0
    %377 = vmatprep.subr.mxu0 0.0
    %378 = vmatpush1.xpose.msra.mxu0 0.0
    %379 = vmatprep.subr.mxu0 0.0
    %380 = vmatpush1.xpose.msra.mxu0 0.0
    %381 = vmatprep.subr.mxu0 0.0
    %382 = vmatpush1.xpose.msra.mxu0 0.0
    %383 = vmatprep.subr.mxu0 0.0
    %384 = vmatpush1.xpose.msra.mxu0 0.0
    %385 = vmatprep.subr.mxu0 0.0
    %386 = vmatpush1.xpose.msra.mxu0 0.0
    %387 = vmatprep.subr.mxu0 0.0
    %388 = vmatpush1.xpose.msra.mxu0 0.0
    %389 = vmatprep.subr.mxu0 0.0
    %390 = vmatpush1.xpose.msra.mxu0 0.0
    %391 = vmatprep.subr.mxu0 0.0
    %392 = vmatpush1.xpose.msra.mxu0 0.0
    %393 = vmatprep.subr.mxu0 0.0
    %394 = vmatpush1.xpose.msra.mxu0 0.0
    %395 = vmatprep.subr.mxu0 0.0
    %396 = vmatpush1.xpose.msra.mxu0 0.0
    %397 = vmatprep.subr.mxu0 0.0
    %398 = vmatpush1.xpose.msra.mxu0 0.0
    %399 = vmatprep.subr.mxu0 0.0
    %400 = vmatpush1.xpose.msra.mxu0 0.0
    %401 = vmatprep.subr.mxu0 0.0
    %402 = vmatpush1.xpose.msra.mxu0 0.0
    %403 = vmatprep.subr.mxu0 0.0
    %404 = vmatpush1.xpose.msra.mxu0 0.0
    %405 = vmatprep.subr.mxu0 0.0
    %406 = vmatpush1.xpose.msra.mxu0 0.0
    %407 = vmatprep.subr.mxu0 0.0
    %408 = vmatpush1.xpose.msra.mxu0 0.0
    %409 = vmatprep.subr.mxu0 0.0
    %410 = vmatpush1.xpose.msra.mxu0 0.0
    %411 = vmatprep.subr.mxu0 0.0
    %412 = vmatpush1.xpose.msra.mxu0 0.0
    %413 = vmatprep.mubr.f32.mxu0 0.0
    %414 = vmatmul.mubr.f32.gmra.mrb[0].mxu0 %v344
    %v415 = vpop.f32.mrb[0].mxu0
    %v416 = vadd.f32 0.0, %v415
    %v417 = vpop.f32.mrb[0].mxu0
    %418 = vdwg.mxu0
    %v420 = vsel %vm65, %v144, 0
    %v423 = vsel %vm65, %v238, 0
    %425 = vmatprep.subr.mxu0 0.0
    %426 = vmatpush1.xpose.msra.mxu0 %v423
    %427 = vmatprep.subr.mxu0 0.0
    %428 = vmatpush1.xpose.msra.mxu0 0.0
    %429 = vmatprep.subr.mxu0 0.0
    %430 = vmatpush1.xpose.msra.mxu0 0.0
    %431 = vmatprep.subr.mxu0 0.0
    %432 = vmatpush1.xpose.msra.mxu0 0.0
    %433 = vmatprep.subr.mxu0 0.0
    %434 = vmatpush1.xpose.msra.mxu0 0.0
    %435 = vmatprep.subr.mxu0 0.0
    %436 = vmatpush1.xpose.msra.mxu0 0.0
    %437 = vmatprep.subr.mxu0 0.0
    %438 = vmatpush1.xpose.msra.mxu0 0.0
    %439 = vmatprep.subr.mxu0 0.0
    %440 = vmatpush1.xpose.msra.mxu0 0.0
    %441 = vmatprep.subr.mxu0 0.0
    %442 = vmatpush1.xpose.msra.mxu0 0.0
    %443 = vmatprep.subr.mxu0 0.0
    %444 = vmatpush1.xpose.msra.mxu0 0.0
    %445 = vmatprep.subr.mxu0 0.0
    %446 = vmatpush1.xpose.msra.mxu0 0.0
    %447 = vmatprep.subr.mxu0 0.0
    %448 = vmatpush1.xpose.msra.mxu0 0.0
    %449 = vmatprep.subr.mxu0 0.0
    %450 = vmatpush1.xpose.msra.mxu0 0.0
    %451 = vmatprep.subr.mxu0 0.0
    %452 = vmatpush1.xpose.msra.mxu0 0.0
    %453 = vmatprep.subr.mxu0 0.0
    %454 = vmatpush1.xpose.msra.mxu0 0.0
    %455 = vmatprep.subr.mxu0 0.0
    %456 = vmatpush1.xpose.msra.mxu0 0.0
    %457 = vmatprep.subr.mxu0 0.0
    %458 = vmatpush1.xpose.msra.mxu0 0.0
    %459 = vmatprep.subr.mxu0 0.0
    %460 = vmatpush1.xpose.msra.mxu0 0.0
    %461 = vmatprep.subr.mxu0 0.0
    %462 = vmatpush1.xpose.msra.mxu0 0.0
    %463 = vmatprep.subr.mxu0 0.0
    %464 = vmatpush1.xpose.msra.mxu0 0.0
    %465 = vmatprep.subr.mxu0 0.0
    %466 = vmatpush1.xpose.msra.mxu0 0.0
    %467 = vmatprep.subr.mxu0 0.0
    %468 = vmatpush1.xpose.msra.mxu0 0.0
    %469 = vmatprep.subr.mxu0 0.0
    %470 = vmatpush1.xpose.msra.mxu0 0.0
    %471 = vmatprep.subr.mxu0 0.0
    %472 = vmatpush1.xpose.msra.mxu0 0.0
    %473 = vmatprep.subr.mxu0 0.0
    %474 = vmatpush1.xpose.msra.mxu0 0.0
    %475 = vmatprep.subr.mxu0 0.0
    %476 = vmatpush1.xpose.msra.mxu0 0.0
    %477 = vmatprep.subr.mxu0 0.0
    %478 = vmatpush1.xpose.msra.mxu0 0.0
    %479 = vmatprep.subr.mxu0 0.0
    %480 = vmatpush1.xpose.msra.mxu0 0.0
    %481 = vmatprep.subr.mxu0 0.0
    %482 = vmatpush1.xpose.msra.mxu0 0.0
    %483 = vmatprep.subr.mxu0 0.0
    %484 = vmatpush1.xpose.msra.mxu0 0.0
    %485 = vmatprep.subr.mxu0 0.0
    %486 = vmatpush1.xpose.msra.mxu0 0.0
    %487 = vmatprep.subr.mxu0 0.0
    %488 = vmatpush1.xpose.msra.mxu0 0.0
    %489 = vmatprep.mubr.f32.mxu0 0.0
    %490 = vmatmul.mubr.f32.gmra.mrb[0].mxu0 %v420
    %v491 = vpop.f32.mrb[0].mxu0
    %v492 = vadd.f32 0.0, %v491
    %v493 = vpop.f32.mrb[0].mxu0
    %494 = vdwg.mxu0
    %vm495 = vcmask 64512
    %v497 = vsel %vm495, %v416, 0
    %499 = vmatprep.subr.mxu0 0.0
    %500 = vmatpush1.msra.mxu0 %v327
    %501 = vmatprep.subr.mxu0 0.0
    %502 = vmatpush1.msra.mxu0 0.0
    %503 = vmatprep.subr.mxu0 0.0
    %504 = vmatpush1.msra.mxu0 0.0
    %505 = vmatprep.subr.mxu0 0.0
    %506 = vmatpush1.msra.mxu0 0.0
    %507 = vmatprep.subr.mxu0 0.0
    %508 = vmatpush1.msra.mxu0 0.0
    %509 = vmatprep.subr.mxu0 0.0
    %510 = vmatpush1.msra.mxu0 0.0
    %511 = vmatprep.subr.mxu0 0.0
    %512 = vmatpush1.msra.mxu0 0.0
    %513 = vmatprep.subr.mxu0 0.0
    %514 = vmatpush1.msra.mxu0 0.0
    %515 = vmatprep.subr.mxu0 0.0
    %516 = vmatpush1.msra.mxu0 0.0
    %517 = vmatprep.subr.mxu0 0.0
    %518 = vmatpush1.msra.mxu0 0.0
    %519 = vmatprep.subr.mxu0 0.0
    %520 = vmatpush1.msra.mxu0 0.0
    %521 = vmatprep.subr.mxu0 0.0
    %522 = vmatpush1.msra.mxu0 0.0
    %523 = vmatprep.subr.mxu0 0.0
    %524 = vmatpush1.msra.mxu0 0.0
    %525 = vmatprep.subr.mxu0 0.0
    %526 = vmatpush1.msra.mxu0 0.0
    %527 = vmatprep.subr.mxu0 0.0
    %528 = vmatpush1.msra.mxu0 0.0
    %529 = vmatprep.subr.mxu0 0.0
    %530 = vmatpush1.msra.mxu0 0.0
    %531 = vmatprep.subr.mxu0 0.0
    %532 = vmatpush1.msra.mxu0 0.0
    %533 = vmatprep.subr.mxu0 0.0
    %534 = vmatpush1.msra.mxu0 0.0
    %535 = vmatprep.subr.mxu0 0.0
    %536 = vmatpush1.msra.mxu0 0.0
    %537 = vmatprep.subr.mxu0 0.0
    %538 = vmatpush1.msra.mxu0 0.0
    %539 = vmatprep.subr.mxu0 0.0
    %540 = vmatpush1.msra.mxu0 0.0
    %541 = vmatprep.subr.mxu0 0.0
    %542 = vmatpush1.msra.mxu0 0.0
    %543 = vmatprep.subr.mxu0 0.0
    %544 = vmatpush1.msra.mxu0 0.0
    %545 = vmatprep.subr.mxu0 0.0
    %546 = vmatpush1.msra.mxu0 0.0
    %547 = vmatprep.subr.mxu0 0.0
    %548 = vmatpush1.msra.mxu0 0.0
    %549 = vmatprep.subr.mxu0 0.0
    %550 = vmatpush1.msra.mxu0 0.0
    %551 = vmatprep.subr.mxu0 0.0
    %552 = vmatpush1.msra.mxu0 0.0
    %553 = vmatprep.subr.mxu0 0.0
    %554 = vmatpush1.msra.mxu0 0.0
    %555 = vmatprep.subr.mxu0 0.0
    %556 = vmatpush1.msra.mxu0 0.0
    %557 = vmatprep.subr.mxu0 0.0
    %558 = vmatpush1.msra.mxu0 0.0
    %559 = vmatprep.subr.mxu0 0.0
    %560 = vmatpush1.msra.mxu0 0.0
    %561 = vmatprep.subr.mxu0 0.0
    %562 = vmatpush1.msra.mxu0 0.0
    %563 = vmatprep.mubr.f32.mxu0 0.0
    %564 = vmatmul.mubr.f32.gmra.mrb[0].mxu0 %v497
    %v565 = vpop.f32.mrb[0].mxu0
    %v566 = vadd.f32 0.0, %v565
    %v567 = vpop.f32.mrb[0].mxu0
    %568 = vdwg.mxu0
    %v570 = vsel %vm495, %v492, 0
    %572 = vmatprep.subr.mxu0 0.0
    %573 = vmatpush1.msra.mxu0 %v332
    %574 = vmatprep.subr.mxu0 0.0
    %575 = vmatpush1.msra.mxu0 0.0
    %576 = vmatprep.subr.mxu0 0.0
    %577 = vmatpush1.msra.mxu0 0.0
    %578 = vmatprep.subr.mxu0 0.0
    %579 = vmatpush1.msra.mxu0 0.0
    %580 = vmatprep.subr.mxu0 0.0
    %581 = vmatpush1.msra.mxu0 0.0
    %582 = vmatprep.subr.mxu0 0.0
    %583 = vmatpush1.msra.mxu0 0.0
    %584 = vmatprep.subr.mxu0 0.0
    %585 = vmatpush1.msra.mxu0 0.0
    %586 = vmatprep.subr.mxu0 0.0
    %587 = vmatpush1.msra.mxu0 0.0
    %588 = vmatprep.subr.mxu0 0.0
    %589 = vmatpush1.msra.mxu0 0.0
    %590 = vmatprep.subr.mxu0 0.0
    %591 = vmatpush1.msra.mxu0 0.0
    %592 = vmatprep.subr.mxu0 0.0
    %593 = vmatpush1.msra.mxu0 0.0
    %594 = vmatprep.subr.mxu0 0.0
    %595 = vmatpush1.msra.mxu0 0.0
    %596 = vmatprep.subr.mxu0 0.0
    %597 = vmatpush1.msra.mxu0 0.0
    %598 = vmatprep.subr.mxu0 0.0
    %599 = vmatpush1.msra.mxu0 0.0
    %600 = vmatprep.subr.mxu0 0.0
    %601 = vmatpush1.msra.mxu0 0.0
    %602 = vmatprep.subr.mxu0 0.0
    %603 = vmatpush1.msra.mxu0 0.0
    %604 = vmatprep.subr.mxu0 0.0
    %605 = vmatpush1.msra.mxu0 0.0
    %606 = vmatprep.subr.mxu0 0.0
    %607 = vmatpush1.msra.mxu0 0.0
    %608 = vmatprep.subr.mxu0 0.0
    %609 = vmatpush1.msra.mxu0 0.0
    %610 = vmatprep.subr.mxu0 0.0
    %611 = vmatpush1.msra.mxu0 0.0
    %612 = vmatprep.subr.mxu0 0.0
    %613 = vmatpush1.msra.mxu0 0.0
    %614 = vmatprep.subr.mxu0 0.0
    %615 = vmatpush1.msra.mxu0 0.0
    %616 = vmatprep.subr.mxu0 0.0
    %617 = vmatpush1.msra.mxu0 0.0
    %618 = vmatprep.subr.mxu0 0.0
    %619 = vmatpush1.msra.mxu0 0.0
    %620 = vmatprep.subr.mxu0 0.0
    %621 = vmatpush1.msra.mxu0 0.0
    %622 = vmatprep.subr.mxu0 0.0
    %623 = vmatpush1.msra.mxu0 0.0
    %624 = vmatprep.subr.mxu0 0.0
    %625 = vmatpush1.msra.mxu0 0.0
    %626 = vmatprep.subr.mxu0 0.0
    %627 = vmatpush1.msra.mxu0 0.0
    %628 = vmatprep.subr.mxu0 0.0
    %629 = vmatpush1.msra.mxu0 0.0
    %630 = vmatprep.subr.mxu0 0.0
    %631 = vmatpush1.msra.mxu0 0.0
    %632 = vmatprep.subr.mxu0 0.0
    %633 = vmatpush1.msra.mxu0 0.0
    %634 = vmatprep.subr.mxu0 0.0
    %635 = vmatpush1.msra.mxu0 0.0
    %636 = vmatprep.mubr.f32.mxu0 0.0
    %637 = vmatmul.mubr.f32.gmra.mrb[0].mxu0 %v570
    %v638 = vpop.f32.mrb[0].mxu0
    %v639 = vadd.f32 0.0, %v638
    %v640 = vpop.f32.mrb[0].mxu0
    %641 = vdwg.mxu0
    %v642 = vadd.f32 %v342, %v566
    %v643 = vadd.f32 %v342, %v639
    %644 = vrot.lane.b32.xlu0 %v139, 96
    %v645 = vpop.permute.xlu0 %644
    %646 = vrot.lane.b32.xlu0 %v233, 96
    %v647 = vpop.permute.xlu0 %646
    %v648 = vsel %vm65, %v645, 0
    %v650 = vsel %vm65, %v647, 0
    %652 = vmatprep.subr.mxu0 0.0
    %653 = vmatpush1.xpose.msra.mxu0 %v650
    %654 = vmatprep.subr.mxu0 0.0
    %655 = vmatpush1.xpose.msra.mxu0 0.0
    %656 = vmatprep.subr.mxu0 0.0
    %657 = vmatpush1.xpose.msra.mxu0 0.0
    %658 = vmatprep.subr.mxu0 0.0
    %659 = vmatpush1.xpose.msra.mxu0 0.0
    %660 = vmatprep.subr.mxu0 0.0
    %661 = vmatpush1.xpose.msra.mxu0 0.0
    %662 = vmatprep.subr.mxu0 0.0
    %663 = vmatpush1.xpose.msra.mxu0 0.0
    %664 = vmatprep.subr.mxu0 0.0
    %665 = vmatpush1.xpose.msra.mxu0 0.0
    %666 = vmatprep.subr.mxu0 0.0
    %667 = vmatpush1.xpose.msra.mxu0 0.0
    %668 = vmatprep.subr.mxu0 0.0
    %669 = vmatpush1.xpose.msra.mxu0 0.0
    %670 = vmatprep.subr.mxu0 0.0
    %671 = vmatpush1.xpose.msra.mxu0 0.0
    %672 = vmatprep.subr.mxu0 0.0
    %673 = vmatpush1.xpose.msra.mxu0 0.0
    %674 = vmatprep.subr.mxu0 0.0
    %675 = vmatpush1.xpose.msra.mxu0 0.0
    %676 = vmatprep.subr.mxu0 0.0
    %677 = vmatpush1.xpose.msra.mxu0 0.0
    %678 = vmatprep.subr.mxu0 0.0
    %679 = vmatpush1.xpose.msra.mxu0 0.0
    %680 = vmatprep.subr.mxu0 0.0
    %681 = vmatpush1.xpose.msra.mxu0 0.0
    %682 = vmatprep.subr.mxu0 0.0
    %683 = vmatpush1.xpose.msra.mxu0 0.0
    %684 = vmatprep.subr.mxu0 0.0
    %685 = vmatpush1.xpose.msra.mxu0 0.0
    %686 = vmatprep.subr.mxu0 0.0
    %687 = vmatpush1.xpose.msra.mxu0 0.0
    %688 = vmatprep.subr.mxu0 0.0
    %689 = vmatpush1.xpose.msra.mxu0 0.0
    %690 = vmatprep.subr.mxu0 0.0
    %691 = vmatpush1.xpose.msra.mxu0 0.0
    %692 = vmatprep.subr.mxu0 0.0
    %693 = vmatpush1.xpose.msra.mxu0 0.0
    %694 = vmatprep.subr.mxu0 0.0
    %695 = vmatpush1.xpose.msra.mxu0 0.0
    %696 = vmatprep.subr.mxu0 0.0
    %697 = vmatpush1.xpose.msra.mxu0 0.0
    %698 = vmatprep.subr.mxu0 0.0
    %699 = vmatpush1.xpose.msra.mxu0 0.0
    %700 = vmatprep.subr.mxu0 0.0
    %701 = vmatpush1.xpose.msra.mxu0 0.0
    %702 = vmatprep.subr.mxu0 0.0
    %703 = vmatpush1.xpose.msra.mxu0 0.0
    %704 = vmatprep.subr.mxu0 0.0
    %705 = vmatpush1.xpose.msra.mxu0 0.0
    %706 = vmatprep.subr.mxu0 0.0
    %707 = vmatpush1.xpose.msra.mxu0 0.0
    %708 = vmatprep.subr.mxu0 0.0
    %709 = vmatpush1.xpose.msra.mxu0 0.0
    %710 = vmatprep.subr.mxu0 0.0
    %711 = vmatpush1.xpose.msra.mxu0 0.0
    %712 = vmatprep.subr.mxu0 0.0
    %713 = vmatpush1.xpose.msra.mxu0 0.0
    %714 = vmatprep.subr.mxu0 0.0
    %715 = vmatpush1.xpose.msra.mxu0 0.0
    %716 = vmatprep.mubr.f32.mxu0 0.0
    %717 = vmatmul.mubr.f32.gmra.mrb[0].mxu0 %v648
    %v718 = vpop.f32.mrb[0].mxu0
    %v719 = vadd.f32 0.0, %v718
    %v720 = vpop.f32.mrb[0].mxu0
    %721 = vdwg.mxu0
    %722 = vrot.lane.b32.xlu0 %v144, 96
    %v723 = vpop.permute.xlu0 %722
    %724 = vrot.lane.b32.xlu0 %v238, 96
    %v725 = vpop.permute.xlu0 %724
    %v726 = vsel %vm65, %v723, 0
    %v728 = vsel %vm65, %v725, 0
    %730 = vmatprep.subr.mxu0 0.0
    %731 = vmatpush1.xpose.msra.mxu0 %v728
    %732 = vmatprep.subr.mxu0 0.0
    %733 = vmatpush1.xpose.msra.mxu0 0.0
    %734 = vmatprep.subr.mxu0 0.0
    %735 = vmatpush1.xpose.msra.mxu0 0.0
    %736 = vmatprep.subr.mxu0 0.0
    %737 = vmatpush1.xpose.msra.mxu0 0.0
    %738 = vmatprep.subr.mxu0 0.0
    %739 = vmatpush1.xpose.msra.mxu0 0.0
    %740 = vmatprep.subr.mxu0 0.0
    %741 = vmatpush1.xpose.msra.mxu0 0.0
    %742 = vmatprep.subr.mxu0 0.0
    %743 = vmatpush1.xpose.msra.mxu0 0.0
    %744 = vmatprep.subr.mxu0 0.0
    %745 = vmatpush1.xpose.msra.mxu0 0.0
    %746 = vmatprep.subr.mxu0 0.0
    %747 = vmatpush1.xpose.msra.mxu0 0.0
    %748 = vmatprep.subr.mxu0 0.0
    %749 = vmatpush1.xpose.msra.mxu0 0.0
    %750 = vmatprep.subr.mxu0 0.0
    %751 = vmatpush1.xpose.msra.mxu0 0.0
    %752 = vmatprep.subr.mxu0 0.0
    %753 = vmatpush1.xpose.msra.mxu0 0.0
    %754 = vmatprep.subr.mxu0 0.0
    %755 = vmatpush1.xpose.msra.mxu0 0.0
    %756 = vmatprep.subr.mxu0 0.0
    %757 = vmatpush1.xpose.msra.mxu0 0.0
    %758 = vmatprep.subr.mxu0 0.0
    %759 = vmatpush1.xpose.msra.mxu0 0.0
    %760 = vmatprep.subr.mxu0 0.0
    %761 = vmatpush1.xpose.msra.mxu0 0.0
    %762 = vmatprep.subr.mxu0 0.0
    %763 = vmatpush1.xpose.msra.mxu0 0.0
    %764 = vmatprep.subr.mxu0 0.0
    %765 = vmatpush1.xpose.msra.mxu0 0.0
    %766 = vmatprep.subr.mxu0 0.0
    %767 = vmatpush1.xpose.msra.mxu0 0.0
    %768 = vmatprep.subr.mxu0 0.0
    %769 = vmatpush1.xpose.msra.mxu0 0.0
    %770 = vmatprep.subr.mxu0 0.0
    %771 = vmatpush1.xpose.msra.mxu0 0.0
    %772 = vmatprep.subr.mxu0 0.0
    %773 = vmatpush1.xpose.msra.mxu0 0.0
    %774 = vmatprep.subr.mxu0 0.0
    %775 = vmatpush1.xpose.msra.mxu0 0.0
    %776 = vmatprep.subr.mxu0 0.0
    %777 = vmatpush1.xpose.msra.mxu0 0.0
    %778 = vmatprep.subr.mxu0 0.0
    %779 = vmatpush1.xpose.msra.mxu0 0.0
    %780 = vmatprep.subr.mxu0 0.0
    %781 = vmatpush1.xpose.msra.mxu0 0.0
    %782 = vmatprep.subr.mxu0 0.0
    %783 = vmatpush1.xpose.msra.mxu0 0.0
    %784 = vmatprep.subr.mxu0 0.0
    %785 = vmatpush1.xpose.msra.mxu0 0.0
    %786 = vmatprep.subr.mxu0 0.0
    %787 = vmatpush1.xpose.msra.mxu0 0.0
    %788 = vmatprep.subr.mxu0 0.0
    %789 = vmatpush1.xpose.msra.mxu0 0.0
    %790 = vmatprep.subr.mxu0 0.0
    %791 = vmatpush1.xpose.msra.mxu0 0.0
    %792 = vmatprep.subr.mxu0 0.0
    %793 = vmatpush1.xpose.msra.mxu0 0.0
    %794 = vmatprep.mubr.f32.mxu0 0.0
    %795 = vmatmul.mubr.f32.gmra.mrb[0].mxu0 %v726
    %v796 = vpop.f32.mrb[0].mxu0
    %v797 = vadd.f32 0.0, %v796
    %v798 = vpop.f32.mrb[0].mxu0
    %799 = vdwg.mxu0
    %801 = vrot.lane.b32.xlu0 %v327, 96
    %v802 = vpop.permute.xlu0 %801
    %v805 = vsel %vm495, %v719, 0
    %807 = vmatprep.subr.mxu0 0.0
    %808 = vmatpush1.msra.mxu0 %v802
    %809 = vmatprep.subr.mxu0 0.0
    %810 = vmatpush1.msra.mxu0 0.0
    %811 = vmatprep.subr.mxu0 0.0
    %812 = vmatpush1.msra.mxu0 0.0
    %813 = vmatprep.subr.mxu0 0.0
    %814 = vmatpush1.msra.mxu0 0.0
    %815 = vmatprep.subr.mxu0 0.0
    %816 = vmatpush1.msra.mxu0 0.0
    %817 = vmatprep.subr.mxu0 0.0
    %818 = vmatpush1.msra.mxu0 0.0
    %819 = vmatprep.subr.mxu0 0.0
    %820 = vmatpush1.msra.mxu0 0.0
    %821 = vmatprep.subr.mxu0 0.0
    %822 = vmatpush1.msra.mxu0 0.0
    %823 = vmatprep.subr.mxu0 0.0
    %824 = vmatpush1.msra.mxu0 0.0
    %825 = vmatprep.subr.mxu0 0.0
    %826 = vmatpush1.msra.mxu0 0.0
    %827 = vmatprep.subr.mxu0 0.0
    %828 = vmatpush1.msra.mxu0 0.0
    %829 = vmatprep.subr.mxu0 0.0
    %830 = vmatpush1.msra.mxu0 0.0
    %831 = vmatprep.subr.mxu0 0.0
    %832 = vmatpush1.msra.mxu0 0.0
    %833 = vmatprep.subr.mxu0 0.0
    %834 = vmatpush1.msra.mxu0 0.0
    %835 = vmatprep.subr.mxu0 0.0
    %836 = vmatpush1.msra.mxu0 0.0
    %837 = vmatprep.subr.mxu0 0.0
    %838 = vmatpush1.msra.mxu0 0.0
    %839 = vmatprep.subr.mxu0 0.0
    %840 = vmatpush1.msra.mxu0 0.0
    %841 = vmatprep.subr.mxu0 0.0
    %842 = vmatpush1.msra.mxu0 0.0
    %843 = vmatprep.subr.mxu0 0.0
    %844 = vmatpush1.msra.mxu0 0.0
    %845 = vmatprep.subr.mxu0 0.0
    %846 = vmatpush1.msra.mxu0 0.0
    %847 = vmatprep.subr.mxu0 0.0
    %848 = vmatpush1.msra.mxu0 0.0
    %849 = vmatprep.subr.mxu0 0.0
    %850 = vmatpush1.msra.mxu0 0.0
    %851 = vmatprep.subr.mxu0 0.0
    %852 = vmatpush1.msra.mxu0 0.0
    %853 = vmatprep.subr.mxu0 0.0
    %854 = vmatpush1.msra.mxu0 0.0
    %855 = vmatprep.subr.mxu0 0.0
    %856 = vmatpush1.msra.mxu0 0.0
    %857 = vmatprep.subr.mxu0 0.0
    %858 = vmatpush1.msra.mxu0 0.0
    %859 = vmatprep.subr.mxu0 0.0
    %860 = vmatpush1.msra.mxu0 0.0
    %861 = vmatprep.subr.mxu0 0.0
    %862 = vmatpush1.msra.mxu0 0.0
    %863 = vmatprep.subr.mxu0 0.0
    %864 = vmatpush1.msra.mxu0 0.0
    %865 = vmatprep.subr.mxu0 0.0
    %866 = vmatpush1.msra.mxu0 0.0
    %867 = vmatprep.subr.mxu0 0.0
    %868 = vmatpush1.msra.mxu0 0.0
    %869 = vmatprep.subr.mxu0 0.0
    %870 = vmatpush1.msra.mxu0 0.0
    %871 = vmatprep.mubr.f32.mxu0 0.0
    %872 = vmatmul.mubr.f32.gmra.mrb[0].mxu0 %v805
    %v873 = vpop.f32.mrb[0].mxu0
    %v874 = vadd.f32 0.0, %v873
    %v875 = vpop.f32.mrb[0].mxu0
    %876 = vdwg.mxu0
    %878 = vrot.lane.b32.xlu0 %v332, 96
    %v879 = vpop.permute.xlu0 %878
    %v882 = vsel %vm495, %v797, 0
    %884 = vmatprep.subr.mxu0 0.0
    %885 = vmatpush1.msra.mxu0 %v879
    %886 = vmatprep.subr.mxu0 0.0
    %887 = vmatpush1.msra.mxu0 0.0
    %888 = vmatprep.subr.mxu0 0.0
    %889 = vmatpush1.msra.mxu0 0.0
    %890 = vmatprep.subr.mxu0 0.0
    %891 = vmatpush1.msra.mxu0 0.0
    %892 = vmatprep.subr.mxu0 0.0
    %893 = vmatpush1.msra.mxu0 0.0
    %894 = vmatprep.subr.mxu0 0.0
    %895 = vmatpush1.msra.mxu0 0.0
    %896 = vmatprep.subr.mxu0 0.0
    %897 = vmatpush1.msra.mxu0 0.0
    %898 = vmatprep.subr.mxu0 0.0
    %899 = vmatpush1.msra.mxu0 0.0
    %900 = vmatprep.subr.mxu0 0.0
    %901 = vmatpush1.msra.mxu0 0.0
    %902 = vmatprep.subr.mxu0 0.0
    %903 = vmatpush1.msra.mxu0 0.0
    %904 = vmatprep.subr.mxu0 0.0
    %905 = vmatpush1.msra.mxu0 0.0
    %906 = vmatprep.subr.mxu0 0.0
    %907 = vmatpush1.msra.mxu0 0.0
    %908 = vmatprep.subr.mxu0 0.0
    %909 = vmatpush1.msra.mxu0 0.0
    %910 = vmatprep.subr.mxu0 0.0
    %911 = vmatpush1.msra.mxu0 0.0
    %912 = vmatprep.subr.mxu0 0.0
    %913 = vmatpush1.msra.mxu0 0.0
    %914 = vmatprep.subr.mxu0 0.0
    %915 = vmatpush1.msra.mxu0 0.0
    %916 = vmatprep.subr.mxu0 0.0
    %917 = vmatpush1.msra.mxu0 0.0
    %918 = vmatprep.subr.mxu0 0.0
    %919 = vmatpush1.msra.mxu0 0.0
    %920 = vmatprep.subr.mxu0 0.0
    %921 = vmatpush1.msra.mxu0 0.0
    %922 = vmatprep.subr.mxu0 0.0
    %923 = vmatpush1.msra.mxu0 0.0
    %924 = vmatprep.subr.mxu0 0.0
    %925 = vmatpush1.msra.mxu0 0.0
    %926 = vmatprep.subr.mxu0 0.0
    %927 = vmatpush1.msra.mxu0 0.0
    %928 = vmatprep.subr.mxu0 0.0
    %929 = vmatpush1.msra.mxu0 0.0
    %930 = vmatprep.subr.mxu0 0.0
    %931 = vmatpush1.msra.mxu0 0.0
    %932 = vmatprep.subr.mxu0 0.0
    %933 = vmatpush1.msra.mxu0 0.0
    %934 = vmatprep.subr.mxu0 0.0
    %935 = vmatpush1.msra.mxu0 0.0
    %936 = vmatprep.subr.mxu0 0.0
    %937 = vmatpush1.msra.mxu0 0.0
    %938 = vmatprep.subr.mxu0 0.0
    %939 = vmatpush1.msra.mxu0 0.0
    %940 = vmatprep.subr.mxu0 0.0
    %941 = vmatpush1.msra.mxu0 0.0
    %942 = vmatprep.subr.mxu0 0.0
    %943 = vmatpush1.msra.mxu0 0.0
    %944 = vmatprep.subr.mxu0 0.0
    %945 = vmatpush1.msra.mxu0 0.0
    %946 = vmatprep.subr.mxu0 0.0
    %947 = vmatpush1.msra.mxu0 0.0
    %948 = vmatprep.mubr.f32.mxu0 0.0
    %949 = vmatmul.mubr.f32.gmra.mrb[0].mxu0 %v882
    %v950 = vpop.f32.mrb[0].mxu0
    %v951 = vadd.f32 0.0, %v950
    %v952 = vpop.f32.mrb[0].mxu0
    %953 = vdwg.mxu0
    %v954 = vadd.f32 %v642, %v874
    %v955 = vadd.f32 %v643, %v951
    %956 = vrot.lane.b32.xlu0 %v139, 64
    %v957 = vpop.permute.xlu0 %956
    %958 = vrot.lane.b32.xlu0 %v233, 64
    %v959 = vpop.permute.xlu0 %958
    %v960 = vsel %vm65, %v957, 0
    %v962 = vsel %vm65, %v959, 0
    %964 = vmatprep.subr.mxu0 0.0
    %965 = vmatpush1.xpose.msra.mxu0 %v962
    %966 = vmatprep.subr.mxu0 0.0
    %967 = vmatpush1.xpose.msra.mxu0 0.0
    %968 = vmatprep.subr.mxu0 0.0
    %969 = vmatpush1.xpose.msra.mxu0 0.0
    %970 = vmatprep.subr.mxu0 0.0
    %971 = vmatpush1.xpose.msra.mxu0 0.0
    %972 = vmatprep.subr.mxu0 0.0
    %973 = vmatpush1.xpose.msra.mxu0 0.0
    %974 = vmatprep.subr.mxu0 0.0
    %975 = vmatpush1.xpose.msra.mxu0 0.0
    %976 = vmatprep.subr.mxu0 0.0
    %977 = vmatpush1.xpose.msra.mxu0 0.0
    %978 = vmatprep.subr.mxu0 0.0
    %979 = vmatpush1.xpose.msra.mxu0 0.0
    %980 = vmatprep.subr.mxu0 0.0
    %981 = vmatpush1.xpose.msra.mxu0 0.0
    %982 = vmatprep.subr.mxu0 0.0
    %983 = vmatpush1.xpose.msra.mxu0 0.0
    %984 = vmatprep.subr.mxu0 0.0
    %985 = vmatpush1.xpose.msra.mxu0 0.0
    %986 = vmatprep.subr.mxu0 0.0
    %987 = vmatpush1.xpose.msra.mxu0 0.0
    %988 = vmatprep.subr.mxu0 0.0
    %989 = vmatpush1.xpose.msra.mxu0 0.0
    %990 = vmatprep.subr.mxu0 0.0
    %991 = vmatpush1.xpose.msra.mxu0 0.0
    %992 = vmatprep.subr.mxu0 0.0
    %993 = vmatpush1.xpose.msra.mxu0 0.0
    %994 = vmatprep.subr.mxu0 0.0
    %995 = vmatpush1.xpose.msra.mxu0 0.0
    %996 = vmatprep.subr.mxu0 0.0
    %997 = vmatpush1.xpose.msra.mxu0 0.0
    %998 = vmatprep.subr.mxu0 0.0
    %999 = vmatpush1.xpose.msra.mxu0 0.0
    %1000 = vmatprep.subr.mxu0 0.0
    %1001 = vmatpush1.xpose.msra.mxu0 0.0
    %1002 = vmatprep.subr.mxu0 0.0
    %1003 = vmatpush1.xpose.msra.mxu0 0.0
    %1004 = vmatprep.subr.mxu0 0.0
    %1005 = vmatpush1.xpose.msra.mxu0 0.0
    %1006 = vmatprep.subr.mxu0 0.0
    %1007 = vmatpush1.xpose.msra.mxu0 0.0
    %1008 = vmatprep.subr.mxu0 0.0
    %1009 = vmatpush1.xpose.msra.mxu0 0.0
    %1010 = vmatprep.subr.mxu0 0.0
    %1011 = vmatpush1.xpose.msra.mxu0 0.0
    %1012 = vmatprep.subr.mxu0 0.0
    %1013 = vmatpush1.xpose.msra.mxu0 0.0
    %1014 = vmatprep.subr.mxu0 0.0
    %1015 = vmatpush1.xpose.msra.mxu0 0.0
    %1016 = vmatprep.subr.mxu0 0.0
    %1017 = vmatpush1.xpose.msra.mxu0 0.0
    %1018 = vmatprep.subr.mxu0 0.0
    %1019 = vmatpush1.xpose.msra.mxu0 0.0
    %1020 = vmatprep.subr.mxu0 0.0
    %1021 = vmatpush1.xpose.msra.mxu0 0.0
    %1022 = vmatprep.subr.mxu0 0.0
    %1023 = vmatpush1.xpose.msra.mxu0 0.0
    %1024 = vmatprep.subr.mxu0 0.0
    %1025 = vmatpush1.xpose.msra.mxu0 0.0
    %1026 = vmatprep.subr.mxu0 0.0
    %1027 = vmatpush1.xpose.msra.mxu0 0.0
    %1028 = vmatprep.mubr.f32.mxu0 0.0
    %1029 = vmatmul.mubr.f32.gmra.mrb[0].mxu0 %v960
    %v1030 = vpop.f32.mrb[0].mxu0
    %v1031 = vadd.f32 0.0, %v1030
    %v1032 = vpop.f32.mrb[0].mxu0
    %1033 = vdwg.mxu0
    %1034 = vrot.lane.b32.xlu0 %v144, 64
    %v1035 = vpop.permute.xlu0 %1034
    %1036 = vrot.lane.b32.xlu0 %v238, 64
    %v1037 = vpop.permute.xlu0 %1036
    %v1038 = vsel %vm65, %v1035, 0
    %v1040 = vsel %vm65, %v1037, 0
    %1042 = vmatprep.subr.mxu0 0.0
    %1043 = vmatpush1.xpose.msra.mxu0 %v1040
    %1044 = vmatprep.subr.mxu0 0.0
    %1045 = vmatpush1.xpose.msra.mxu0 0.0
    %1046 = vmatprep.subr.mxu0 0.0
    %1047 = vmatpush1.xpose.msra.mxu0 0.0
    %1048 = vmatprep.subr.mxu0 0.0
    %1049 = vmatpush1.xpose.msra.mxu0 0.0
    %1050 = vmatprep.subr.mxu0 0.0
    %1051 = vmatpush1.xpose.msra.mxu0 0.0
    %1052 = vmatprep.subr.mxu0 0.0
    %1053 = vmatpush1.xpose.msra.mxu0 0.0
    %1054 = vmatprep.subr.mxu0 0.0
    %1055 = vmatpush1.xpose.msra.mxu0 0.0
    %1056 = vmatprep.subr.mxu0 0.0
    %1057 = vmatpush1.xpose.msra.mxu0 0.0
    %1058 = vmatprep.subr.mxu0 0.0
    %1059 = vmatpush1.xpose.msra.mxu0 0.0
    %1060 = vmatprep.subr.mxu0 0.0
    %1061 = vmatpush1.xpose.msra.mxu0 0.0
    %1062 = vmatprep.subr.mxu0 0.0
    %1063 = vmatpush1.xpose.msra.mxu0 0.0
    %1064 = vmatprep.subr.mxu0 0.0
    %1065 = vmatpush1.xpose.msra.mxu0 0.0
    %1066 = vmatprep.subr.mxu0 0.0
    %1067 = vmatpush1.xpose.msra.mxu0 0.0
    %1068 = vmatprep.subr.mxu0 0.0
    %1069 = vmatpush1.xpose.msra.mxu0 0.0
    %1070 = vmatprep.subr.mxu0 0.0
    %1071 = vmatpush1.xpose.msra.mxu0 0.0
    %1072 = vmatprep.subr.mxu0 0.0
    %1073 = vmatpush1.xpose.msra.mxu0 0.0
    %1074 = vmatprep.subr.mxu0 0.0
    %1075 = vmatpush1.xpose.msra.mxu0 0.0
    %1076 = vmatprep.subr.mxu0 0.0
    %1077 = vmatpush1.xpose.msra.mxu0 0.0
    %1078 = vmatprep.subr.mxu0 0.0
    %1079 = vmatpush1.xpose.msra.mxu0 0.0
    %1080 = vmatprep.subr.mxu0 0.0
    %1081 = vmatpush1.xpose.msra.mxu0 0.0
    %1082 = vmatprep.subr.mxu0 0.0
    %1083 = vmatpush1.xpose.msra.mxu0 0.0
    %1084 = vmatprep.subr.mxu0 0.0
    %1085 = vmatpush1.xpose.msra.mxu0 0.0
    %1086 = vmatprep.subr.mxu0 0.0
    %1087 = vmatpush1.xpose.msra.mxu0 0.0
    %1088 = vmatprep.subr.mxu0 0.0
    %1089 = vmatpush1.xpose.msra.mxu0 0.0
    %1090 = vmatprep.subr.mxu0 0.0
    %1091 = vmatpush1.xpose.msra.mxu0 0.0
    %1092 = vmatprep.subr.mxu0 0.0
    %1093 = vmatpush1.xpose.msra.mxu0 0.0
    %1094 = vmatprep.subr.mxu0 0.0
    %1095 = vmatpush1.xpose.msra.mxu0 0.0
    %1096 = vmatprep.subr.mxu0 0.0
    %1097 = vmatpush1.xpose.msra.mxu0 0.0
    %1098 = vmatprep.subr.mxu0 0.0
    %1099 = vmatpush1.xpose.msra.mxu0 0.0
    %1100 = vmatprep.subr.mxu0 0.0
    %1101 = vmatpush1.xpose.msra.mxu0 0.0
    %1102 = vmatprep.subr.mxu0 0.0
    %1103 = vmatpush1.xpose.msra.mxu0 0.0
    %1104 = vmatprep.subr.mxu0 0.0
    %1105 = vmatpush1.xpose.msra.mxu0 0.0
    %1106 = vmatprep.mubr.f32.mxu0 0.0
    %1107 = vmatmul.mubr.f32.gmra.mrb[0].mxu0 %v1038
    %v1108 = vpop.f32.mrb[0].mxu0
    %v1109 = vadd.f32 0.0, %v1108
    %v1110 = vpop.f32.mrb[0].mxu0
    %1111 = vdwg.mxu0
    %1112 = vrot.lane.b32.xlu0 %v327, 64
    %v1113 = vpop.permute.xlu0 %1112
    %v1116 = vsel %vm495, %v1031, 0
    %1118 = vmatprep.subr.mxu0 0.0
    %1119 = vmatpush1.msra.mxu0 %v1113
    %1120 = vmatprep.subr.mxu0 0.0
    %1121 = vmatpush1.msra.mxu0 0.0
    %1122 = vmatprep.subr.mxu0 0.0
    %1123 = vmatpush1.msra.mxu0 0.0
    %1124 = vmatprep.subr.mxu0 0.0
    %1125 = vmatpush1.msra.mxu0 0.0
    %1126 = vmatprep.subr.mxu0 0.0
    %1127 = vmatpush1.msra.mxu0 0.0
    %1128 = vmatprep.subr.mxu0 0.0
    %1129 = vmatpush1.msra.mxu0 0.0
    %1130 = vmatprep.subr.mxu0 0.0
    %1131 = vmatpush1.msra.mxu0 0.0
    %1132 = vmatprep.subr.mxu0 0.0
    %1133 = vmatpush1.msra.mxu0 0.0
    %1134 = vmatprep.subr.mxu0 0.0
    %1135 = vmatpush1.msra.mxu0 0.0
    %1136 = vmatprep.subr.mxu0 0.0
    %1137 = vmatpush1.msra.mxu0 0.0
    %1138 = vmatprep.subr.mxu0 0.0
    %1139 = vmatpush1.msra.mxu0 0.0
    %1140 = vmatprep.subr.mxu0 0.0
    %1141 = vmatpush1.msra.mxu0 0.0
    %1142 = vmatprep.subr.mxu0 0.0
    %1143 = vmatpush1.msra.mxu0 0.0
    %1144 = vmatprep.subr.mxu0 0.0
    %1145 = vmatpush1.msra.mxu0 0.0
    %1146 = vmatprep.subr.mxu0 0.0
    %1147 = vmatpush1.msra.mxu0 0.0
    %1148 = vmatprep.subr.mxu0 0.0
    %1149 = vmatpush1.msra.mxu0 0.0
    %1150 = vmatprep.subr.mxu0 0.0
    %1151 = vmatpush1.msra.mxu0 0.0
    %1152 = vmatprep.subr.mxu0 0.0
    %1153 = vmatpush1.msra.mxu0 0.0
    %1154 = vmatprep.subr.mxu0 0.0
    %1155 = vmatpush1.msra.mxu0 0.0
    %1156 = vmatprep.subr.mxu0 0.0
    %1157 = vmatpush1.msra.mxu0 0.0
    %1158 = vmatprep.subr.mxu0 0.0
    %1159 = vmatpush1.msra.mxu0 0.0
    %1160 = vmatprep.subr.mxu0 0.0
    %1161 = vmatpush1.msra.mxu0 0.0
    %1162 = vmatprep.subr.mxu0 0.0
    %1163 = vmatpush1.msra.mxu0 0.0
    %1164 = vmatprep.subr.mxu0 0.0
    %1165 = vmatpush1.msra.mxu0 0.0
    %1166 = vmatprep.subr.mxu0 0.0
    %1167 = vmatpush1.msra.mxu0 0.0
    %1168 = vmatprep.subr.mxu0 0.0
    %1169 = vmatpush1.msra.mxu0 0.0
    %1170 = vmatprep.subr.mxu0 0.0
    %1171 = vmatpush1.msra.mxu0 0.0
    %1172 = vmatprep.subr.mxu0 0.0
    %1173 = vmatpush1.msra.mxu0 0.0
    %1174 = vmatprep.subr.mxu0 0.0
    %1175 = vmatpush1.msra.mxu0 0.0
    %1176 = vmatprep.subr.mxu0 0.0
    %1177 = vmatpush1.msra.mxu0 0.0
    %1178 = vmatprep.subr.mxu0 0.0
    %1179 = vmatpush1.msra.mxu0 0.0
    %1180 = vmatprep.subr.mxu0 0.0
    %1181 = vmatpush1.msra.mxu0 0.0
    %1182 = vmatprep.mubr.f32.mxu0 0.0
    %1183 = vmatmul.mubr.f32.gmra.mrb[0].mxu0 %v1116
    %v1184 = vpop.f32.mrb[0].mxu0
    %v1185 = vadd.f32 0.0, %v1184
    %v1186 = vpop.f32.mrb[0].mxu0
    %1187 = vdwg.mxu0
    %1188 = vrot.lane.b32.xlu0 %v332, 64
    %v1189 = vpop.permute.xlu0 %1188
    %v1192 = vsel %vm495, %v1109, 0
    %1194 = vmatprep.subr.mxu0 0.0
    %1195 = vmatpush1.msra.mxu0 %v1189
    %1196 = vmatprep.subr.mxu0 0.0
    %1197 = vmatpush1.msra.mxu0 0.0
    %1198 = vmatprep.subr.mxu0 0.0
    %1199 = vmatpush1.msra.mxu0 0.0
    %1200 = vmatprep.subr.mxu0 0.0
    %1201 = vmatpush1.msra.mxu0 0.0
    %1202 = vmatprep.subr.mxu0 0.0
    %1203 = vmatpush1.msra.mxu0 0.0
    %1204 = vmatprep.subr.mxu0 0.0
    %1205 = vmatpush1.msra.mxu0 0.0
    %1206 = vmatprep.subr.mxu0 0.0
    %1207 = vmatpush1.msra.mxu0 0.0
    %1208 = vmatprep.subr.mxu0 0.0
    %1209 = vmatpush1.msra.mxu0 0.0
    %1210 = vmatprep.subr.mxu0 0.0
    %1211 = vmatpush1.msra.mxu0 0.0
    %1212 = vmatprep.subr.mxu0 0.0
    %1213 = vmatpush1.msra.mxu0 0.0
    %1214 = vmatprep.subr.mxu0 0.0
    %1215 = vmatpush1.msra.mxu0 0.0
    %1216 = vmatprep.subr.mxu0 0.0
    %1217 = vmatpush1.msra.mxu0 0.0
    %1218 = vmatprep.subr.mxu0 0.0
    %1219 = vmatpush1.msra.mxu0 0.0
    %1220 = vmatprep.subr.mxu0 0.0
    %1221 = vmatpush1.msra.mxu0 0.0
    %1222 = vmatprep.subr.mxu0 0.0
    %1223 = vmatpush1.msra.mxu0 0.0
    %1224 = vmatprep.subr.mxu0 0.0
    %1225 = vmatpush1.msra.mxu0 0.0
    %1226 = vmatprep.subr.mxu0 0.0
    %1227 = vmatpush1.msra.mxu0 0.0
    %1228 = vmatprep.subr.mxu0 0.0
    %1229 = vmatpush1.msra.mxu0 0.0
    %1230 = vmatprep.subr.mxu0 0.0
    %1231 = vmatpush1.msra.mxu0 0.0
    %1232 = vmatprep.subr.mxu0 0.0
    %1233 = vmatpush1.msra.mxu0 0.0
    %1234 = vmatprep.subr.mxu0 0.0
    %1235 = vmatpush1.msra.mxu0 0.0
    %1236 = vmatprep.subr.mxu0 0.0
    %1237 = vmatpush1.msra.mxu0 0.0
    %1238 = vmatprep.subr.mxu0 0.0
    %1239 = vmatpush1.msra.mxu0 0.0
    %1240 = vmatprep.subr.mxu0 0.0
    %1241 = vmatpush1.msra.mxu0 0.0
    %1242 = vmatprep.subr.mxu0 0.0
    %1243 = vmatpush1.msra.mxu0 0.0
    %1244 = vmatprep.subr.mxu0 0.0
    %1245 = vmatpush1.msra.mxu0 0.0
    %1246 = vmatprep.subr.mxu0 0.0
    %1247 = vmatpush1.msra.mxu0 0.0
    %1248 = vmatprep.subr.mxu0 0.0
    %1249 = vmatpush1.msra.mxu0 0.0
    %1250 = vmatprep.subr.mxu0 0.0
    %1251 = vmatpush1.msra.mxu0 0.0
    %1252 = vmatprep.subr.mxu0 0.0
    %1253 = vmatpush1.msra.mxu0 0.0
    %1254 = vmatprep.subr.mxu0 0.0
    %1255 = vmatpush1.msra.mxu0 0.0
    %1256 = vmatprep.subr.mxu0 0.0
    %1257 = vmatpush1.msra.mxu0 0.0
    %1258 = vmatprep.mubr.f32.mxu0 0.0
    %1259 = vmatmul.mubr.f32.gmra.mrb[0].mxu0 %v1192
    %v1260 = vpop.f32.mrb[0].mxu0
    %v1261 = vadd.f32 0.0, %v1260
    %v1262 = vpop.f32.mrb[0].mxu0
    %1263 = vdwg.mxu0
    %v1264 = vadd.f32 %v954, %v1185
    %v1265 = vadd.f32 %v955, %v1261
    %1266 = vrot.lane.b32.xlu0 %v139, 32
    %v1267 = vpop.permute.xlu0 %1266
    %1268 = vrot.lane.b32.xlu0 %v233, 32
    %v1269 = vpop.permute.xlu0 %1268
    %v1270 = vsel %vm65, %v1267, 0
    %v1272 = vsel %vm65, %v1269, 0
    %1274 = vmatprep.subr.mxu0 0.0
    %1275 = vmatpush1.xpose.msra.mxu0 %v1272
    %1276 = vmatprep.subr.mxu0 0.0
    %1277 = vmatpush1.xpose.msra.mxu0 0.0
    %1278 = vmatprep.subr.mxu0 0.0
    %1279 = vmatpush1.xpose.msra.mxu0 0.0
    %1280 = vmatprep.subr.mxu0 0.0
    %1281 = vmatpush1.xpose.msra.mxu0 0.0
    %1282 = vmatprep.subr.mxu0 0.0
    %1283 = vmatpush1.xpose.msra.mxu0 0.0
    %1284 = vmatprep.subr.mxu0 0.0
    %1285 = vmatpush1.xpose.msra.mxu0 0.0
    %1286 = vmatprep.subr.mxu0 0.0
    %1287 = vmatpush1.xpose.msra.mxu0 0.0
    %1288 = vmatprep.subr.mxu0 0.0
    %1289 = vmatpush1.xpose.msra.mxu0 0.0
    %1290 = vmatprep.subr.mxu0 0.0
    %1291 = vmatpush1.xpose.msra.mxu0 0.0
    %1292 = vmatprep.subr.mxu0 0.0
    %1293 = vmatpush1.xpose.msra.mxu0 0.0
    %1294 = vmatprep.subr.mxu0 0.0
    %1295 = vmatpush1.xpose.msra.mxu0 0.0
    %1296 = vmatprep.subr.mxu0 0.0
    %1297 = vmatpush1.xpose.msra.mxu0 0.0
    %1298 = vmatprep.subr.mxu0 0.0
    %1299 = vmatpush1.xpose.msra.mxu0 0.0
    %1300 = vmatprep.subr.mxu0 0.0
    %1301 = vmatpush1.xpose.msra.mxu0 0.0
    %1302 = vmatprep.subr.mxu0 0.0
    %1303 = vmatpush1.xpose.msra.mxu0 0.0
    %1304 = vmatprep.subr.mxu0 0.0
    %1305 = vmatpush1.xpose.msra.mxu0 0.0
    %1306 = vmatprep.subr.mxu0 0.0
    %1307 = vmatpush1.xpose.msra.mxu0 0.0
    %1308 = vmatprep.subr.mxu0 0.0
    %1309 = vmatpush1.xpose.msra.mxu0 0.0
    %1310 = vmatprep.subr.mxu0 0.0
    %1311 = vmatpush1.xpose.msra.mxu0 0.0
    %1312 = vmatprep.subr.mxu0 0.0
    %1313 = vmatpush1.xpose.msra.mxu0 0.0
    %1314 = vmatprep.subr.mxu0 0.0
    %1315 = vmatpush1.xpose.msra.mxu0 0.0
    %1316 = vmatprep.subr.mxu0 0.0
    %1317 = vmatpush1.xpose.msra.mxu0 0.0
    %1318 = vmatprep.subr.mxu0 0.0
    %1319 = vmatpush1.xpose.msra.mxu0 0.0
    %1320 = vmatprep.subr.mxu0 0.0
    %1321 = vmatpush1.xpose.msra.mxu0 0.0
    %1322 = vmatprep.subr.mxu0 0.0
    %1323 = vmatpush1.xpose.msra.mxu0 0.0
    %1324 = vmatprep.subr.mxu0 0.0
    %1325 = vmatpush1.xpose.msra.mxu0 0.0
    %1326 = vmatprep.subr.mxu0 0.0
    %1327 = vmatpush1.xpose.msra.mxu0 0.0
    %1328 = vmatprep.subr.mxu0 0.0
    %1329 = vmatpush1.xpose.msra.mxu0 0.0
    %1330 = vmatprep.subr.mxu0 0.0
    %1331 = vmatpush1.xpose.msra.mxu0 0.0
    %1332 = vmatprep.subr.mxu0 0.0
    %1333 = vmatpush1.xpose.msra.mxu0 0.0
    %1334 = vmatprep.subr.mxu0 0.0
    %1335 = vmatpush1.xpose.msra.mxu0 0.0
    %1336 = vmatprep.subr.mxu0 0.0
    %1337 = vmatpush1.xpose.msra.mxu0 0.0
    %1338 = vmatprep.mubr.f32.mxu0 0.0
    %1339 = vmatmul.mubr.f32.gmra.mrb[0].mxu0 %v1270
    %v1340 = vpop.f32.mrb[0].mxu0
    %v1341 = vadd.f32 0.0, %v1340
    %v1342 = vpop.f32.mrb[0].mxu0
    %1343 = vdwg.mxu0
    %1344 = vrot.lane.b32.xlu0 %v144, 32
    %v1345 = vpop.permute.xlu0 %1344
    %1346 = vrot.lane.b32.xlu0 %v238, 32
    %v1347 = vpop.permute.xlu0 %1346
    %v1348 = vsel %vm65, %v1345, 0
    %v1350 = vsel %vm65, %v1347, 0
    %1352 = vmatprep.subr.mxu0 0.0
    %1353 = vmatpush1.xpose.msra.mxu0 %v1350
    %1354 = vmatprep.subr.mxu0 0.0
    %1355 = vmatpush1.xpose.msra.mxu0 0.0
    %1356 = vmatprep.subr.mxu0 0.0
    %1357 = vmatpush1.xpose.msra.mxu0 0.0
    %1358 = vmatprep.subr.mxu0 0.0
    %1359 = vmatpush1.xpose.msra.mxu0 0.0
    %1360 = vmatprep.subr.mxu0 0.0
    %1361 = vmatpush1.xpose.msra.mxu0 0.0
    %1362 = vmatprep.subr.mxu0 0.0
    %1363 = vmatpush1.xpose.msra.mxu0 0.0
    %1364 = vmatprep.subr.mxu0 0.0
    %1365 = vmatpush1.xpose.msra.mxu0 0.0
    %1366 = vmatprep.subr.mxu0 0.0
    %1367 = vmatpush1.xpose.msra.mxu0 0.0
    %1368 = vmatprep.subr.mxu0 0.0
    %1369 = vmatpush1.xpose.msra.mxu0 0.0
    %1370 = vmatprep.subr.mxu0 0.0
    %1371 = vmatpush1.xpose.msra.mxu0 0.0
    %1372 = vmatprep.subr.mxu0 0.0
    %1373 = vmatpush1.xpose.msra.mxu0 0.0
    %1374 = vmatprep.subr.mxu0 0.0
    %1375 = vmatpush1.xpose.msra.mxu0 0.0
    %1376 = vmatprep.subr.mxu0 0.0
    %1377 = vmatpush1.xpose.msra.mxu0 0.0
    %1378 = vmatprep.subr.mxu0 0.0
    %1379 = vmatpush1.xpose.msra.mxu0 0.0
    %1380 = vmatprep.subr.mxu0 0.0
    %1381 = vmatpush1.xpose.msra.mxu0 0.0
    %1382 = vmatprep.subr.mxu0 0.0
    %1383 = vmatpush1.xpose.msra.mxu0 0.0
    %1384 = vmatprep.subr.mxu0 0.0
    %1385 = vmatpush1.xpose.msra.mxu0 0.0
    %1386 = vmatprep.subr.mxu0 0.0
    %1387 = vmatpush1.xpose.msra.mxu0 0.0
    %1388 = vmatprep.subr.mxu0 0.0
    %1389 = vmatpush1.xpose.msra.mxu0 0.0
    %1390 = vmatprep.subr.mxu0 0.0
    %1391 = vmatpush1.xpose.msra.mxu0 0.0
    %1392 = vmatprep.subr.mxu0 0.0
    %1393 = vmatpush1.xpose.msra.mxu0 0.0
    %1394 = vmatprep.subr.mxu0 0.0
    %1395 = vmatpush1.xpose.msra.mxu0 0.0
    %1396 = vmatprep.subr.mxu0 0.0
    %1397 = vmatpush1.xpose.msra.mxu0 0.0
    %1398 = vmatprep.subr.mxu0 0.0
    %1399 = vmatpush1.xpose.msra.mxu0 0.0
    %1400 = vmatprep.subr.mxu0 0.0
    %1401 = vmatpush1.xpose.msra.mxu0 0.0
    %1402 = vmatprep.subr.mxu0 0.0
    %1403 = vmatpush1.xpose.msra.mxu0 0.0
    %1404 = vmatprep.subr.mxu0 0.0
    %1405 = vmatpush1.xpose.msra.mxu0 0.0
    %1406 = vmatprep.subr.mxu0 0.0
    %1407 = vmatpush1.xpose.msra.mxu0 0.0
    %1408 = vmatprep.subr.mxu0 0.0
    %1409 = vmatpush1.xpose.msra.mxu0 0.0
    %1410 = vmatprep.subr.mxu0 0.0
    %1411 = vmatpush1.xpose.msra.mxu0 0.0
    %1412 = vmatprep.subr.mxu0 0.0
    %1413 = vmatpush1.xpose.msra.mxu0 0.0
    %1414 = vmatprep.subr.mxu0 0.0
    %1415 = vmatpush1.xpose.msra.mxu0 0.0
    %1416 = vmatprep.mubr.f32.mxu0 0.0
    %1417 = vmatmul.mubr.f32.gmra.mrb[0].mxu0 %v1348
    %v1418 = vpop.f32.mrb[0].mxu0
    %v1419 = vadd.f32 0.0, %v1418
    %v1420 = vpop.f32.mrb[0].mxu0
    %1421 = vdwg.mxu0
    %1422 = vrot.lane.b32.xlu0 %v327, 32
    %v1423 = vpop.permute.xlu0 %1422
    %v1426 = vsel %vm495, %v1341, 0
    %1428 = vmatprep.subr.mxu0 0.0
    %1429 = vmatpush1.msra.mxu0 %v1423
    %1430 = vmatprep.subr.mxu0 0.0
    %1431 = vmatpush1.msra.mxu0 0.0
    %1432 = vmatprep.subr.mxu0 0.0
    %1433 = vmatpush1.msra.mxu0 0.0
    %1434 = vmatprep.subr.mxu0 0.0
    %1435 = vmatpush1.msra.mxu0 0.0
    %1436 = vmatprep.subr.mxu0 0.0
    %1437 = vmatpush1.msra.mxu0 0.0
    %1438 = vmatprep.subr.mxu0 0.0
    %1439 = vmatpush1.msra.mxu0 0.0
    %1440 = vmatprep.subr.mxu0 0.0
    %1441 = vmatpush1.msra.mxu0 0.0
    %1442 = vmatprep.subr.mxu0 0.0
    %1443 = vmatpush1.msra.mxu0 0.0
    %1444 = vmatprep.subr.mxu0 0.0
    %1445 = vmatpush1.msra.mxu0 0.0
    %1446 = vmatprep.subr.mxu0 0.0
    %1447 = vmatpush1.msra.mxu0 0.0
    %1448 = vmatprep.subr.mxu0 0.0
    %1449 = vmatpush1.msra.mxu0 0.0
    %1450 = vmatprep.subr.mxu0 0.0
    %1451 = vmatpush1.msra.mxu0 0.0
    %1452 = vmatprep.subr.mxu0 0.0
    %1453 = vmatpush1.msra.mxu0 0.0
    %1454 = vmatprep.subr.mxu0 0.0
    %1455 = vmatpush1.msra.mxu0 0.0
    %1456 = vmatprep.subr.mxu0 0.0
    %1457 = vmatpush1.msra.mxu0 0.0
    %1458 = vmatprep.subr.mxu0 0.0
    %1459 = vmatpush1.msra.mxu0 0.0
    %1460 = vmatprep.subr.mxu0 0.0
    %1461 = vmatpush1.msra.mxu0 0.0
    %1462 = vmatprep.subr.mxu0 0.0
    %1463 = vmatpush1.msra.mxu0 0.0
    %1464 = vmatprep.subr.mxu0 0.0
    %1465 = vmatpush1.msra.mxu0 0.0
    %1466 = vmatprep.subr.mxu0 0.0
    %1467 = vmatpush1.msra.mxu0 0.0
    %1468 = vmatprep.subr.mxu0 0.0
    %1469 = vmatpush1.msra.mxu0 0.0
    %1470 = vmatprep.subr.mxu0 0.0
    %1471 = vmatpush1.msra.mxu0 0.0
    %1472 = vmatprep.subr.mxu0 0.0
    %1473 = vmatpush1.msra.mxu0 0.0
    %1474 = vmatprep.subr.mxu0 0.0
    %1475 = vmatpush1.msra.mxu0 0.0
    %1476 = vmatprep.subr.mxu0 0.0
    %1477 = vmatpush1.msra.mxu0 0.0
    %1478 = vmatprep.subr.mxu0 0.0
    %1479 = vmatpush1.msra.mxu0 0.0
    %1480 = vmatprep.subr.mxu0 0.0
    %1481 = vmatpush1.msra.mxu0 0.0
    %1482 = vmatprep.subr.mxu0 0.0
    %1483 = vmatpush1.msra.mxu0 0.0
    %1484 = vmatprep.subr.mxu0 0.0
    %1485 = vmatpush1.msra.mxu0 0.0
    %1486 = vmatprep.subr.mxu0 0.0
    %1487 = vmatpush1.msra.mxu0 0.0
    %1488 = vmatprep.subr.mxu0 0.0
    %1489 = vmatpush1.msra.mxu0 0.0
    %1490 = vmatprep.subr.mxu0 0.0
    %1491 = vmatpush1.msra.mxu0 0.0
    %1492 = vmatprep.mubr.f32.mxu0 0.0
    %1493 = vmatmul.mubr.f32.gmra.mrb[0].mxu0 %v1426
    %v1494 = vpop.f32.mrb[0].mxu0
    %v1495 = vadd.f32 0.0, %v1494
    %v1496 = vpop.f32.mrb[0].mxu0
    %1497 = vdwg.mxu0
    %1498 = vrot.lane.b32.xlu0 %v332, 32
    %v1499 = vpop.permute.xlu0 %1498
    %v1502 = vsel %vm495, %v1419, 0
    %1504 = vmatprep.subr.mxu0 0.0
    %1505 = vmatpush1.msra.mxu0 %v1499
    %1506 = vmatprep.subr.mxu0 0.0
    %1507 = vmatpush1.msra.mxu0 0.0
    %1508 = vmatprep.subr.mxu0 0.0
    %1509 = vmatpush1.msra.mxu0 0.0
    %1510 = vmatprep.subr.mxu0 0.0
    %1511 = vmatpush1.msra.mxu0 0.0
    %1512 = vmatprep.subr.mxu0 0.0
    %1513 = vmatpush1.msra.mxu0 0.0
    %1514 = vmatprep.subr.mxu0 0.0
    %1515 = vmatpush1.msra.mxu0 0.0
    %1516 = vmatprep.subr.mxu0 0.0
    %1517 = vmatpush1.msra.mxu0 0.0
    %1518 = vmatprep.subr.mxu0 0.0
    %1519 = vmatpush1.msra.mxu0 0.0
    %1520 = vmatprep.subr.mxu0 0.0
    %1521 = vmatpush1.msra.mxu0 0.0
    %1522 = vmatprep.subr.mxu0 0.0
    %1523 = vmatpush1.msra.mxu0 0.0
    %1524 = vmatprep.subr.mxu0 0.0
    %1525 = vmatpush1.msra.mxu0 0.0
    %1526 = vmatprep.subr.mxu0 0.0
    %1527 = vmatpush1.msra.mxu0 0.0
    %1528 = vmatprep.subr.mxu0 0.0
    %1529 = vmatpush1.msra.mxu0 0.0
    %1530 = vmatprep.subr.mxu0 0.0
    %1531 = vmatpush1.msra.mxu0 0.0
    %1532 = vmatprep.subr.mxu0 0.0
    %1533 = vmatpush1.msra.mxu0 0.0
    %1534 = vmatprep.subr.mxu0 0.0
    %1535 = vmatpush1.msra.mxu0 0.0
    %1536 = vmatprep.subr.mxu0 0.0
    %1537 = vmatpush1.msra.mxu0 0.0
    %1538 = vmatprep.subr.mxu0 0.0
    %1539 = vmatpush1.msra.mxu0 0.0
    %1540 = vmatprep.subr.mxu0 0.0
    %1541 = vmatpush1.msra.mxu0 0.0
    %1542 = vmatprep.subr.mxu0 0.0
    %1543 = vmatpush1.msra.mxu0 0.0
    %1544 = vmatprep.subr.mxu0 0.0
    %1545 = vmatpush1.msra.mxu0 0.0
    %1546 = vmatprep.subr.mxu0 0.0
    %1547 = vmatpush1.msra.mxu0 0.0
    %1548 = vmatprep.subr.mxu0 0.0
    %1549 = vmatpush1.msra.mxu0 0.0
    %1550 = vmatprep.subr.mxu0 0.0
    %1551 = vmatpush1.msra.mxu0 0.0
    %1552 = vmatprep.subr.mxu0 0.0
    %1553 = vmatpush1.msra.mxu0 0.0
    %1554 = vmatprep.subr.mxu0 0.0
    %1555 = vmatpush1.msra.mxu0 0.0
    %1556 = vmatprep.subr.mxu0 0.0
    %1557 = vmatpush1.msra.mxu0 0.0
    %1558 = vmatprep.subr.mxu0 0.0
    %1559 = vmatpush1.msra.mxu0 0.0
    %1560 = vmatprep.subr.mxu0 0.0
    %1561 = vmatpush1.msra.mxu0 0.0
    %1562 = vmatprep.subr.mxu0 0.0
    %1563 = vmatpush1.msra.mxu0 0.0
    %1564 = vmatprep.subr.mxu0 0.0
    %1565 = vmatpush1.msra.mxu0 0.0
    %1566 = vmatprep.subr.mxu0 0.0
    %1567 = vmatpush1.msra.mxu0 0.0
    %1568 = vmatprep.mubr.f32.mxu0 0.0
    %1569 = vmatmul.mubr.f32.gmra.mrb[0].mxu0 %v1502
    %v1570 = vpop.f32.mrb[0].mxu0
    %v1571 = vadd.f32 0.0, %v1570
    %v1572 = vpop.f32.mrb[0].mxu0
    %1573 = vdwg.mxu0
    %v1574 = vadd.f32 %v1264, %v1495
    %v1575 = vadd.f32 %v1265, %v1571
    %1576 = vst.msk [vmem:[#allocation7] sm:$0xff] %vm65, %v1574
    %1577 = vst.msk [vmem:[#allocation7 + $0x8] sm:$0xff] %vm65, %v1575
    // Predicated region
    $region26: #{tpu_custom_call.1} parent=1 // pred_check
      _
    $region27: #{tpu_custom_call.1} parent=1 // pred_check_branch
      %1579 = sbr.rel (0) target = $region29
    $region28: #{tpu_custom_call.1} parent=1 // pred_region
      %s1581 = ssub.s32 256, 256
      %1582 = vsyncadd [#allocation4], %s1581
      %s1583 = sshll.u32 [#allocation7], 4
      %s1584 = int_to_ptr.vmem [resolvable:$true] %s1583
      %1589 = dma.vmem_to_hbm [thread:$0]  %s1584, 256, %s4, [#allocation4], 128, 128, 8
    $region29: #{tpu_custom_call.1} parent=1 // pred_fallthru
      _
    // Predicated region
    $region30: #{tpu_custom_call.1} parent=1 // pred_check
      _
    $region31: #{tpu_custom_call.1} parent=1 // pred_check_branch
      %1591 = sbr.rel (0) target = $region33
    $region32: #{tpu_custom_call.1} parent=1 // pred_region
      %1592 = dma.done [#allocation4], 256
    $region33: #{tpu_custom_call.1} parent=1 // pred_fallthru
      _
    %1593 = vsyncpa [#allocation3], 1
    %1594 = vsyncpa [#allocation6], 1
    %1595 = vsyncpa [#allocation4], 1

</llo_original>
